<compile_context>
chip_gen: v7x
topology: tpu7x:2x2x1
jax: 0.10.0
libtpu: 0.0.40
codegen_flags: <defaults>
</compile_context>

<pallas_src>
import functools

import jax
import jax.numpy as jnp
from jax.experimental import pallas as pl
from jax.experimental.pallas import tpu as pltpu


# ----------------------------- config (cfg stand-in) ------------------------
class CFG:
    IM_W = 32
    IM_H = 32
    STRIDE = 4
    DET_ROI_SIZE = 7
    TEMP_ROI_SIZE = 3
    FRCNN_ROI_SIZE = 7
    RPN_CONV_SIZE = DET_ROI_SIZE - TEMP_ROI_SIZE + 1       # 5 (valid cross-corr)
    RATIOS = (0.5, 1.0, 2.0)
    SCALES = (8.0,)
    TRACK_RATIOS = (0.5, 1.0)
    TRACK_SCALES = (8.0,)
    NUM_CLASSES = 2
    BATCH_SIZE = 2                                         # IMS_PER_BATCH // len(GPU_ID)
    NMS = False        # TODO(synk): CUDA NMS pick (data-dependent output count) has no Pallas equivalent
    BBOX_NORMALIZE_TARGETS_PRECOMPUTED = True
    RPN_BBOX_STD_DEV = (0.1, 0.1, 0.2, 0.2)
    GAIN = 0.01
    NUM_SAMPLED_PROPOSALS = 16                             # deterministic stand-in for get_proposal_target
    NUM_FG_PER_IMAGE = 4
    FEATURES_OUT_CH = 16                                   # scaled down from 256
    TRACK_RPN_OUT_CH = 8                                   # scaled down from 256
    RPN_OUT_CH = 16                                        # scaled down from 512
    BACKBONE_MID_CH = 32
    FRCNN_HIDDEN = 64


# ----------------------------- TC-count aware tiling --------------------------
def _num_tensorcores():
    try:
        kind = jax.devices()[0].device_kind.lower()
        return 2 if "v7" in kind else 1
    except Exception:
        return 1


_NUM_TC = _num_tensorcores()


def _choose_tm(M):
    """One block per TensorCore.  v5e/v6e: grid=(1,) (grid is a serial loop,
    splitting only adds per-step overhead).  v7x: two blocks so both TCs get
    work, but never more.  Falls back to a single block for small / odd M."""
    if _NUM_TC >= 2 and M >= 256 and M % 2 == 0 and (M // 2) % 8 == 0:
        return M // 2
    return M
# TODO(synk): for production channel counts (256/512) a K-tiled accumulator
# path + vmem_limit_bytes would be needed on v7x (64 MiB VMEM); at these demo
# shapes every operand fits a single VMEM block with large margin.


# ----------------------------- Pallas kernels ---------------------------------
def _mm_kernel(a_ref, w_ref, b_ref, o_ref, *, relu):
    # bf16 MXU operands (cast in-kernel, no extra HBM pass), f32 accumulate.
    acc = jnp.dot(a_ref[...].astype(jnp.bfloat16),
                  w_ref[...].astype(jnp.bfloat16),
                  preferred_element_type=jnp.float32)
    acc = acc + b_ref[...]
    if relu:
        acc = jnp.maximum(acc, 0.0)
    o_ref[...] = acc


def _mm2_kernel(a_ref, w1_ref, b1_ref, w2_ref, b2_ref, o_ref, *, relu1, relu2):
    # Fused (A @ W1 + b1) -> relu -> (@ W2 + b2); the intermediate never hits HBM.
    h = jnp.dot(a_ref[...].astype(jnp.bfloat16),
                w1_ref[...].astype(jnp.bfloat16),
                preferred_element_type=jnp.float32) + b1_ref[...]
    if relu1:
        h = jnp.maximum(h, 0.0)
    out = jnp.dot(h.astype(jnp.bfloat16),
                  w2_ref[...].astype(jnp.bfloat16),
                  preferred_element_type=jnp.float32) + b2_ref[...]
    if relu2:
        out = jnp.maximum(out, 0.0)
    o_ref[...] = out


def _mm3_kernel(a_ref, w1_ref, b1_ref, w2_ref, b2_ref, w3_ref, b3_ref, o_ref):
    # Fused fastRCNN MLP: fc1 -> ReLU -> fc2 -> ReLU -> cls|bbox head.
    h = jnp.maximum(jnp.dot(a_ref[...].astype(jnp.bfloat16),
                            w1_ref[...].astype(jnp.bfloat16),
                            preferred_element_type=jnp.float32) + b1_ref[...], 0.0)
    h = jnp.maximum(jnp.dot(h.astype(jnp.bfloat16),
                            w2_ref[...].astype(jnp.bfloat16),
                            preferred_element_type=jnp.float32) + b2_ref[...], 0.0)
    o_ref[...] = jnp.dot(h.astype(jnp.bfloat16),
                         w3_ref[...].astype(jnp.bfloat16),
                         preferred_element_type=jnp.float32) + b3_ref[...]


def _dual_bmm_kernel(pc_ref, wc_ref, pb_ref, wb_ref, oc_ref, ob_ref):
    # Both siamese cross-correlations (cls + bbox) in one launch, one grid step.
    oc_ref[...] = jnp.einsum('bmk,bkn->bmn',
                             pc_ref[...].astype(jnp.bfloat16),
                             wc_ref[...].astype(jnp.bfloat16),
                             preferred_element_type=jnp.float32)
    ob_ref[...] = jnp.einsum('bmk,bkn->bmn',
                             pb_ref[...].astype(jnp.bfloat16),
                             wb_ref[...].astype(jnp.bfloat16),
                             preferred_element_type=jnp.float32)


# ----------------------------- Pallas wrappers --------------------------------
def pallas_matmul_bias(a, b, bias=None, relu=False):
    """out = relu?(a @ b + bias); bf16 cast in-kernel, f32 accumulation."""
    M, K = a.shape
    K2, N = b.shape
    assert K == K2, (a.shape, b.shape)
    if bias is None:
        bias = jnp.zeros((N,), jnp.float32)
    bias2 = bias.astype(jnp.float32).reshape(1, N)
    tm = _choose_tm(M)
    grid = (M // tm,)
    return pl.pallas_call(
        functools.partial(_mm_kernel, relu=relu),
        out_shape=jax.ShapeDtypeStruct((M, N), jnp.float32),
        grid_spec=pltpu.PrefetchScalarGridSpec(
            num_scalar_prefetch=0,
            grid=grid,
            in_specs=[
                pl.BlockSpec((tm, K), lambda i: (i, 0)),
                pl.BlockSpec((K, N), lambda i: (0, 0)),
                pl.BlockSpec((1, N), lambda i: (0, 0)),
            ],
            out_specs=pl.BlockSpec((tm, N), lambda i: (i, 0)),
        ),
        compiler_params=pltpu.CompilerParams(
            dimension_semantics=("parallel",)),
    )(a, b, bias2)


def pallas_matmul_chain2(a, w1, b1, w2, b2, relu1=True, relu2=False):
    """Fused relu?(a @ w1 + b1) @ w2 + b2 (one launch, intermediate in VMEM)."""
    M, K = a.shape
    K1, H = w1.shape
    H2, N = w2.shape
    assert K == K1 and H == H2, (a.shape, w1.shape, w2.shape)
    tm = _choose_tm(M)
    grid = (M // tm,)
    return pl.pallas_call(
        functools.partial(_mm2_kernel, relu1=relu1, relu2=relu2),
        out_shape=jax.ShapeDtypeStruct((M, N), jnp.float32),
        grid_spec=pltpu.PrefetchScalarGridSpec(
            num_scalar_prefetch=0,
            grid=grid,
            in_specs=[
                pl.BlockSpec((tm, K), lambda i: (i, 0)),
                pl.BlockSpec((K, H), lambda i: (0, 0)),
                pl.BlockSpec((1, H), lambda i: (0, 0)),
                pl.BlockSpec((H, N), lambda i: (0, 0)),
                pl.BlockSpec((1, N), lambda i: (0, 0)),
            ],
            out_specs=pl.BlockSpec((tm, N), lambda i: (i, 0)),
        ),
        compiler_params=pltpu.CompilerParams(
            dimension_semantics=("parallel",)),
    )(a, w1, b1.astype(jnp.float32).reshape(1, H),
      w2, b2.astype(jnp.float32).reshape(1, N))


def pallas_mlp3(a, w1, b1, w2, b2, w3, b3):
    """Fused 3-layer MLP (fastRCNN head) in a single pallas_call."""
    M, K = a.shape
    _, H1 = w1.shape
    _, H2 = w2.shape
    _, N = w3.shape
    tm = _choose_tm(M)
    grid = (M // tm,)
    return pl.pallas_call(
        _mm3_kernel,
        out_shape=jax.ShapeDtypeStruct((M, N), jnp.float32),
        grid_spec=pltpu.PrefetchScalarGridSpec(
            num_scalar_prefetch=0,
            grid=grid,
            in_specs=[
                pl.BlockSpec((tm, K), lambda i: (i, 0)),
                pl.BlockSpec((K, H1), lambda i: (0, 0)),
                pl.BlockSpec((1, H1), lambda i: (0, 0)),
                pl.BlockSpec((H1, H2), lambda i: (0, 0)),
                pl.BlockSpec((1, H2), lambda i: (0, 0)),
                pl.BlockSpec((H2, N), lambda i: (0, 0)),
                pl.BlockSpec((1, N), lambda i: (0, 0)),
            ],
            out_specs=pl.BlockSpec((tm, N), lambda i: (i, 0)),
        ),
        compiler_params=pltpu.CompilerParams(
            dimension_semantics=("parallel",)),
    )(a, w1, b1.astype(jnp.float32).reshape(1, H1),
      w2, b2.astype(jnp.float32).reshape(1, H2),
      w3, b3.astype(jnp.float32).reshape(1, N))


def pallas_dual_bmm(pc, wc, pb, wb):
    """Two batched matmuls in one launch, single grid step (all operands tiny)."""
    B, M, K = pc.shape
    Nc = wc.shape[2]
    Nb = wb.shape[2]
    assert pb.shape == (B, M, K) and wc.shape[:2] == (B, K) and wb.shape[:2] == (B, K)
    return pl.pallas_call(
        _dual_bmm_kernel,
        out_shape=(jax.ShapeDtypeStruct((B, M, Nc), jnp.float32),
                   jax.ShapeDtypeStruct((B, M, Nb), jnp.float32)),
        grid_spec=pltpu.PrefetchScalarGridSpec(
            num_scalar_prefetch=0,
            grid=(1,),
            in_specs=[
                pl.BlockSpec((B, M, K), lambda i: (0, 0, 0)),
                pl.BlockSpec((B, K, Nc), lambda i: (0, 0, 0)),
                pl.BlockSpec((B, M, K), lambda i: (0, 0, 0)),
                pl.BlockSpec((B, K, Nb), lambda i: (0, 0, 0)),
            ],
            out_specs=[
                pl.BlockSpec((B, M, Nc), lambda i: (0, 0, 0)),
                pl.BlockSpec((B, M, Nb), lambda i: (0, 0, 0)),
            ],
        ),
        compiler_params=pltpu.CompilerParams(
            dimension_semantics=("arbitrary",)),
    )(pc, wc, pb, wb)


# ----------------------------- conv = im2col + Pallas matmul ------------------
def _im2col(x, KH, KW, stride=1, padding=0):
    """# TODO(synk): im2col patch extraction stays in plain JAX; at these sizes
    the patch matrix is tiny and the (fused) matmuls in Pallas dominate."""
    N, C, H, W = x.shape
    if padding:
        x = jnp.pad(x, ((0, 0), (0, 0), (padding, padding), (padding, padding)))
    OH = (H + 2 * padding - KH) // stride + 1
    OW = (W + 2 * padding - KW) // stride + 1
    patches = []
    for i in range(KH):
        for j in range(KW):
            patches.append(x[:, :, i:i + stride * OH:stride, j:j + stride * OW:stride])
    p = jnp.stack(patches, axis=2)                               # (N, C, KH*KW, OH, OW)
    p = jnp.transpose(p, (0, 3, 4, 1, 2)).reshape(N * OH * OW, C * KH * KW)
    return p, N, OH, OW


def conv2d(x, w, b=None, stride=1, padding=0, relu=False):
    """x: (N, C, H, W)  w: (OC, C, KH, KW)  -> (N, OC, OH, OW)."""
    OC, C, KH, KW = w.shape
    assert x.shape[1] == C
    p, N, OH, OW = _im2col(x, KH, KW, stride, padding)
    wm = w.reshape(OC, C * KH * KW).T
    out = pallas_matmul_bias(p, wm, b, relu=relu)                # (N*OH*OW, OC)
    return jnp.transpose(out.reshape(N, OH, OW, OC), (0, 3, 1, 2))


def conv2d_head_fused(x, w_conv, b_conv, w_head, b_head, stride=1, padding=0,
                      relu_mid=True, relu_out=False):
    """KHxKW conv (+ReLU) followed by a 1x1 "head" conv, fused into ONE
    pallas_call (the conv activation never touches HBM)."""
    OC, C, KH, KW = w_conv.shape
    assert x.shape[1] == C
    p, N, OH, OW = _im2col(x, KH, KW, stride, padding)
    w1 = w_conv.reshape(OC, C * KH * KW).T                       # (C*KH*KW, OC)
    if w_head.ndim == 4:
        w_head = w_head.reshape(w_head.shape[0], w_head.shape[1])
    w2 = w_head.T                                                # (OC, OC_head)
    out = pallas_matmul_chain2(p, w1, b_conv, w2, b_head,
                               relu1=relu_mid, relu2=relu_out)   # (rows, OC_head)
    OCH = w2.shape[1]
    return jnp.transpose(out.reshape(N, OH, OW, OCH), (0, 3, 1, 2))


def _xcorr_patches(det_feat, KH, KW):
    n, C, H, W = det_feat.shape
    OH, OW = H - KH + 1, W - KW + 1
    patches = []
    for i in range(KH):
        for j in range(KW):
            patches.append(det_feat[:, :, i:i + OH, j:j + OW])
    p = jnp.stack(patches, axis=2)                               # (n, C, KH*KW, OH, OW)
    p = jnp.transpose(p, (0, 3, 4, 1, 2)).reshape(n, OH * OW, C * KH * KW)
    return p, OH, OW


def siamese_xcorr_dual(det_cls, cls_kernels, det_bbox, bbox_kernels):
    """Per-pair valid cross-correlation for BOTH branches in one launch.
    det_*: (n, C, H, W); *_kernels: (n, OC, C, KH, KW) -> (n, OC, OH, OW).
    Only the matched det/temp pairs are computed (no n^2 + diagonal select)."""
    n, OCc, C, KH, KW = cls_kernels.shape
    OCb = bbox_kernels.shape[1]
    pc, OH, OW = _xcorr_patches(det_cls, KH, KW)
    pb, _, _ = _xcorr_patches(det_bbox, KH, KW)
    wc = jnp.transpose(cls_kernels.reshape(n, OCc, C * KH * KW), (0, 2, 1))
    wb = jnp.transpose(bbox_kernels.reshape(n, OCb, C * KH * KW), (0, 2, 1))
    oc, ob = pallas_dual_bmm(pc, wc, pb, wb)                     # (n, OH*OW, OC*)
    oc = jnp.transpose(oc.reshape(n, OH, OW, OCc), (0, 3, 1, 2))
    ob = jnp.transpose(ob.reshape(n, OH, OW, OCb), (0, 3, 1, 2))
    return oc, ob


# ----------------------------- box / ROI helpers ------------------------------
def clip_boxes(boxes, bound):
    x1 = jnp.clip(boxes[:, 0], 0.0, bound[0])
    y1 = jnp.clip(boxes[:, 1], 0.0, bound[1])
    x2 = jnp.clip(boxes[:, 2], 0.0, bound[0])
    y2 = jnp.clip(boxes[:, 3], 0.0, bound[1])
    return jnp.stack([x1, y1, x2, y2], axis=1)


def bbox_transform_inv(boxes, deltas):
    widths = boxes[:, 2] - boxes[:, 0] + 1.0
    heights = boxes[:, 3] - boxes[:, 1] + 1.0
    ctr_x = boxes[:, 0] + 0.5 * widths
    ctr_y = boxes[:, 1] + 0.5 * heights
    dx, dy, dw, dh = deltas[:, 0], deltas[:, 1], deltas[:, 2], deltas[:, 3]
    pred_ctr_x = dx * widths + ctr_x
    pred_ctr_y = dy * heights + ctr_y
    pred_w = jnp.exp(dw) * widths
    pred_h = jnp.exp(dh) * heights
    return jnp.stack([pred_ctr_x - 0.5 * pred_w, pred_ctr_y - 0.5 * pred_h,
                      pred_ctr_x + 0.5 * pred_w, pred_ctr_y + 0.5 * pred_h], axis=1)


def crop_and_resize(pool_size, feature_map, boxes, box_ind):
    """Bilinear crop-and-resize (RoIAlign-like, spatial_scale=1).
    # TODO(synk): exact RoIAlignFunction sub-bin sampling is approximated by a
    # (pool_h x pool_w) bilinear grid; gather is plain-JAX glue (not Pallas)."""
    if boxes.shape[1] == 5:
        boxes = boxes[:, :4]
    ph, pw = pool_size
    H, W = feature_map.shape[2], feature_map.shape[3]
    x1, y1, x2, y2 = boxes[:, 0], boxes[:, 1], boxes[:, 2], boxes[:, 3]
    iy = jnp.arange(ph, dtype=jnp.float32) / max(ph - 1, 1)
    ix = jnp.arange(pw, dtype=jnp.float32) / max(pw - 1, 1)
    ys = y1[:, None] + (y2 - y1)[:, None] * iy[None, :]          # (n, ph)
    xs = x1[:, None] + (x2 - x1)[:, None] * ix[None, :]          # (n, pw)

    feat = feature_map[box_ind]                                  # (n, C, H, W)
    y0 = jnp.floor(ys)
    x0 = jnp.floor(xs)
    wy = ys - y0
    wx = xs - x0
    y0i = jnp.clip(y0, 0, H - 1).astype(jnp.int32)
    y1i = jnp.clip(y0 + 1, 0, H - 1).astype(jnp.int32)
    x0i = jnp.clip(x0, 0, W - 1).astype(jnp.int32)
    x1i = jnp.clip(x0 + 1, 0, W - 1).astype(jnp.int32)

    def gather_hw(f, yi, xi):
        n, C, Hh, Ww = f.shape
        phh, pww = yi.shape[1], xi.shape[1]
        yi_b = jnp.broadcast_to(yi[:, None, :, None], (n, C, phh, Ww))
        fy = jnp.take_along_axis(f, yi_b, axis=2)
        xi_b = jnp.broadcast_to(xi[:, None, None, :], (n, C, phh, pww))
        return jnp.take_along_axis(fy, xi_b, axis=3)

    v00 = gather_hw(feat, y0i, x0i)
    v01 = gather_hw(feat, y0i, x1i)
    v10 = gather_hw(feat, y1i, x0i)
    v11 = gather_hw(feat, y1i, x1i)
    wy_ = wy[:, None, :, None]
    wx_ = wx[:, None, None, :]
    return (v00 * (1 - wy_) * (1 - wx_) + v01 * (1 - wy_) * wx_
            + v10 * wy_ * (1 - wx_) + v11 * wy_ * wx_)


def make_anchors(out_h, out_w, stride, ratios, scales):
    rows = []
    for h in range(out_h):
        for w in range(out_w):
            cx = (w + 0.5) * stride
            cy = (h + 0.5) * stride
            for r in ratios:
                for s in scales:
                    bw = s * (1.0 / r) ** 0.5
                    bh = s * r ** 0.5
                    rows.append([cx - bw / 2, cy - bh / 2, cx + bw / 2, cy + bh / 2])
    return jnp.asarray(rows, jnp.float32)


# ----------------------------- MotFRCNN --------------------------------------
class MotFRCNN:
    def __init__(self, im_width, im_height):
        cfg = CFG
        self.stride = cfg.STRIDE
        self.bound = (im_width, im_height)
        self.out_size = (im_width // self.stride, im_height // self.stride)
        self.K = len(cfg.RATIOS) * len(cfg.SCALES)
        self.TK = len(cfg.TRACK_RATIOS) * len(cfg.TRACK_SCALES)
        self.det_roi_size = cfg.DET_ROI_SIZE
        self.temp_roi_size = cfg.TEMP_ROI_SIZE
        self.frcnn_roi_size = cfg.FRCNN_ROI_SIZE
        self.rpn_conv_size = cfg.RPN_CONV_SIZE
        self.batch_size = cfg.BATCH_SIZE
        self.features_out_ch = cfg.FEATURES_OUT_CH
        self.track_rpn_out_ch = cfg.TRACK_RPN_OUT_CH
        self.rpn_out_ch = cfg.RPN_OUT_CH
        self.num_anchors = self.K * self.rpn_conv_size ** 2
        self.params = self._init_params(jax.random.PRNGKey(42))

    # ------ deterministic parameter init (init_module('norm', gain=0.01)) ----
    def _init_params(self, key):
        cfg = CFG
        g = cfg.GAIN
        keys = iter(jax.random.split(key, 16))
        cw = lambda oc, ic, kh, kw: jax.random.normal(next(keys), (oc, ic, kh, kw), jnp.float32) * g
        fw = lambda din, dout: jax.random.normal(next(keys), (din, dout), jnp.float32) * g
        z = lambda n: jnp.zeros((n,), jnp.float32)
        foc, trc, rc = self.features_out_ch, self.track_rpn_out_ch, self.rpn_out_ch
        return {
            # TODO(synk): resnet50 + full FPN pyramid replaced by a small conv stack
            # with the same output contract (N, features_out_ch, H/stride, W/stride).
            'features': {'conv1_w': cw(cfg.BACKBONE_MID_CH, 3, 3, 3), 'conv1_b': z(cfg.BACKBONE_MID_CH),
                         'conv2_w': cw(foc, cfg.BACKBONE_MID_CH, 3, 3), 'conv2_b': z(foc)},
            'fpn': {'lat_w': cw(foc, foc, 1, 1), 'lat_b': z(foc)},
            'track_rpn': {'conv_w': cw(trc, foc, 3, 3), 'conv_b': z(trc),
                          'cls_w': cw(2 * self.TK * trc, trc, 1, 1), 'cls_b': z(2 * self.TK * trc),
                          'bbox_w': cw(4 * self.TK * trc, trc, 1, 1), 'bbox_b': z(4 * self.TK * trc)},
            'detect_rpn': {'conv_w': cw(rc, foc, 3, 3), 'conv_b': z(rc),
                           'cls_w': cw(2 * self.K, rc, 1, 1), 'cls_b': z(2 * self.K),
                           'bbox_w': cw(4 * self.K, rc, 1, 1), 'bbox_b': z(4 * self.K)},
            'det_cls_conv': {'w': cw(trc, foc, 1, 1), 'b': z(trc)},
            'det_bbox_conv': {'w': cw(trc, foc, 1, 1), 'b': z(trc)},
            'fastRCNN': {'fc1_w': fw(foc * self.frcnn_roi_size ** 2, cfg.FRCNN_HIDDEN), 'fc1_b': z(cfg.FRCNN_HIDDEN),
                         'fc2_w': fw(cfg.FRCNN_HIDDEN, cfg.FRCNN_HIDDEN), 'fc2_b': z(cfg.FRCNN_HIDDEN),
                         'cls_w': fw(cfg.FRCNN_HIDDEN, cfg.NUM_CLASSES), 'cls_b': z(cfg.NUM_CLASSES),
                         'bbox_w': fw(cfg.FRCNN_HIDDEN, 4 * cfg.NUM_CLASSES), 'bbox_b': z(4 * cfg.NUM_CLASSES)},
        }

    # ------------------------------ sub-modules ------------------------------
    def features_and_fpn(self, x):
        p = self.params
        c1 = conv2d(x, p['features']['conv1_w'], p['features']['conv1_b'],
                    stride=2, padding=1, relu=True)
        # conv2 (3x3 + ReLU) fused with the FPN 1x1 lateral conv: one launch,
        # conv2's activation never written to HBM.
        # TODO(synk): conv1->conv2 fusion would need in-kernel im2col; skipped.
        return conv2d_head_fused(c1, p['features']['conv2_w'], p['features']['conv2_b'],
                                 p['fpn']['lat_w'], p['fpn']['lat_b'],
                                 stride=2, padding=1, relu_mid=True, relu_out=False)

    def fpn_out(self, z_input, x_input):
        # Run both images through the (shared-weight) backbone as one batch.
        both = jnp.concatenate([z_input, x_input], axis=0)
        pmap = self.features_and_fpn(both)
        nz = z_input.shape[0]
        return pmap[:nz], pmap[nz:]

    def _rpn(self, params, x):
        # 3x3 conv + ReLU + fused 1x1 cls|bbox head in ONE pallas_call.
        cls_ch = params['cls_w'].shape[0]
        w_head = jnp.concatenate([params['cls_w'], params['bbox_w']], axis=0)
        b_head = jnp.concatenate([params['cls_b'], params['bbox_b']], axis=0)
        out = conv2d_head_fused(x, params['conv_w'], params['conv_b'],
                                w_head, b_head, stride=1, padding=1,
                                relu_mid=True, relu_out=False)
        return out[:, :cls_ch], out[:, cls_ch:]

    def fastRCNN(self, roi_features):
        # Entire head (fc1 -> ReLU -> fc2 -> ReLU -> fused cls|bbox) in one launch.
        p = self.params['fastRCNN']
        n = roi_features.shape[0]
        flat = roi_features.reshape(n, -1)
        nc = p['cls_w'].shape[1]
        w3 = jnp.concatenate([p['cls_w'], p['bbox_w']], axis=1)
        b3 = jnp.concatenate([p['cls_b'], p['bbox_b']], axis=0)
        out = pallas_mlp3(flat, p['fc1_w'], p['fc1_b'],
                          p['fc2_w'], p['fc2_b'], w3, b3)
        logits = out[:, :nc]
        bbox = out[:, nc:]
        probs = jax.nn.softmax(logits, axis=1)
        return logits, probs, bbox

    # ----------------------------- proposals ---------------------------------
    def gen_proposals(self, rpn_cls, rpn_bbox, anchors, batch_size):
        cfg = CFG
        out_cls = jax.nn.softmax(rpn_cls, axis=1)[:, 1, :, :]
        out_cls = out_cls.reshape(batch_size, self.K, self.out_size[1], self.out_size[0])
        out_cls = jnp.transpose(out_cls, (0, 2, 3, 1)).reshape(-1, 1)
        out_bbox = jnp.transpose(rpn_bbox, (0, 2, 3, 1)).reshape(-1, 4)
        if cfg.BBOX_NORMALIZE_TARGETS_PRECOMPUTED:
            out_bbox = out_bbox * jnp.asarray(cfg.RPN_BBOX_STD_DEV, jnp.float32)
        if anchors.shape[0] != out_bbox.shape[0]:
            anchors = jnp.tile(anchors, (batch_size, 1))
        bbox_pred = bbox_transform_inv(anchors, out_bbox)
        bbox_pred = clip_boxes(bbox_pred, self.bound)
        bbox_pred_with_cls = jnp.concatenate([bbox_pred, out_cls], axis=1)
        # TODO(synk): cfg.NMS=True path (argsort + CUDA NMS, variable pick count) skipped.
        per_image = bbox_pred_with_cls.shape[0] // batch_size
        return bbox_pred_with_cls.reshape(batch_size, per_image, 5)   # no jnp.split

    def _proposal_targets(self, all_proposals):
        # TODO(synk): get_proposal_target (random fg/bg sampling + IoU matching)
        # replaced by a deterministic top-N selection with fixed fg labels.
        cfg = CFG
        ns, nfg, nc = cfg.NUM_SAMPLED_PROPOSALS, cfg.NUM_FG_PER_IMAGE, cfg.NUM_CLASSES
        batch = all_proposals.shape[0]
        proposals = all_proposals[:, :ns, :4].reshape(batch * ns, 4)
        label_one = jnp.concatenate([jnp.ones((nfg,), jnp.int32),
                                     jnp.zeros((ns - nfg,), jnp.int32)])
        labels = [label_one for _ in range(batch)]
        proposal_cls_targets = jnp.tile(label_one, (batch,))
        total = batch * ns
        proposal_bbox_targets = jnp.zeros((total, 4 * nc), jnp.float32)
        cols = jnp.arange(4 * nc)[None, :]
        cls = proposal_cls_targets[:, None]
        bbox_weights = ((cls > 0) & (cols >= 4 * cls) & (cols < 4 * cls + 4)).astype(jnp.float32)
        return proposals, proposal_cls_targets, proposal_bbox_targets, bbox_weights, labels

    def get_rois(self, featuremap, proposals, num_proposals):
        proposals_all = proposals / (1.0 * self.stride)
        box_inds = jnp.concatenate([jnp.full((num_proposals[i],), i, jnp.int32)
                                    for i in range(len(num_proposals))])
        return crop_and_resize((self.frcnn_roi_size, self.frcnn_roi_size),
                               featuremap, proposals_all, box_inds)

    # ------------------------------ forward -----------------------------------
    def forward(self, roidbs):
        temp_image_list, det_image_list = [], []
        temp_box_list, det_box_list, search_box_list = [], [], []
        temp_num_boxes, det_num_boxes = [], []
        temp_classes_list, det_classes_list = [], []
        best_inds, best_anchors = [], []
        temp_boxes_siam, det_boxes_siam, search_boxes_siam = [], [], []
        for db in roidbs:
            temp_image_list.append(db['temp_image'])
            det_image_list.append(db['det_image'])
            temp_box_list.append(db['temp_boxes4det'])
            det_box_list.append(db['det_boxes4det'])
            temp_classes_list.append(db['temp_classes'])
            det_classes_list.append(db['det_classes'])
            search_box_list.append(db['search_boxes'])
            temp_num_boxes.append(db['temp_boxes4det'].shape[0])
            det_num_boxes.append(db['det_boxes4det'].shape[0])
            best_ind = db['best_ind']
            best_inds.append(best_ind)
            temp_boxes_siam.append(db['temp_boxes'][best_ind])
            det_boxes_siam.append(db['det_boxes'][best_ind])
            search_boxes_siam.append(db['search_boxes'][best_ind])
            best_anchors.append(db['best_anchors'])

        det_anchors = roidbs[0]['anchors']
        temp_image = jnp.concatenate(temp_image_list, axis=0).astype(jnp.float32)
        det_image = jnp.concatenate(det_image_list, axis=0).astype(jnp.float32)
        self.temp_boxes4det = jnp.concatenate(temp_box_list, 0)
        self.det_boxes4det = jnp.concatenate(det_box_list, 0)
        self.temp_classes = jnp.concatenate(temp_classes_list, 0)
        self.det_classes = jnp.concatenate(det_classes_list, 0)
        self.search_boxes = jnp.concatenate(search_box_list, 0)
        self.best_inds = best_inds
        self.temp_boxes4siamese = jnp.stack(temp_boxes_siam, 0)
        self.det_boxes4siamese = jnp.stack(det_boxes_siam, 0)
        self.search_boxes4siamese = jnp.stack(search_boxes_siam, 0)
        self.track_anchors = best_anchors

        # NHWC -> NCHW (matches torch transpose(0, 3, 1, 2))
        temp_image = jnp.transpose(temp_image, (0, 3, 1, 2))
        det_image = jnp.transpose(det_image, (0, 3, 1, 2))
        z, x = self.fpn_out(temp_image, det_image)
        batch_x = jnp.concatenate([z, x], 0)

        temp_boxes4siamese = self.temp_boxes4siamese / (1.0 * self.stride)
        search_boxes4siamese = self.search_boxes4siamese / (1.0 * self.stride)
        bound2 = (x.shape[3], x.shape[2])
        temp_boxes4siamese = clip_boxes(temp_boxes4siamese, bound2)
        search_boxes4siamese = clip_boxes(search_boxes4siamese, bound2)

        # --- siamese rpn begin ---
        box_inds = jnp.zeros((self.batch_size,), jnp.int32)
        temp_box_roi_feat = crop_and_resize((self.temp_roi_size, self.temp_roi_size),
                                            z, temp_boxes4siamese, box_inds)
        det_box_roi_feat = crop_and_resize((self.det_roi_size, self.det_roi_size),
                                           x, search_boxes4siamese, box_inds)

        trc = self.track_rpn_out_ch
        track_rpn_cls_temp, track_rpn_bbox_temp = self._rpn(self.params['track_rpn'],
                                                            temp_box_roi_feat)

        # det_cls_conv / det_bbox_conv share the same input: one fused 1x1 launch.
        det_w = jnp.concatenate([self.params['det_cls_conv']['w'],
                                 self.params['det_bbox_conv']['w']], axis=0)
        det_b = jnp.concatenate([self.params['det_cls_conv']['b'],
                                 self.params['det_bbox_conv']['b']], axis=0)
        det_out = conv2d(det_box_roi_feat, det_w, det_b)
        track_rpn_cls_det = det_out[:, :trc]
        track_rpn_bbox_det = det_out[:, trc:]

        temp_ksize = self.temp_roi_size
        n_boxes = self.det_boxes4siamese.shape[0]
        # Per-pair siamese cross-correlation, both branches in ONE launch
        # (equivalent to F.conv2d over all temps + diagonal selection).
        cls_kernels = track_rpn_cls_temp.reshape(
            n_boxes, 2 * self.TK, trc, temp_ksize, temp_ksize)
        bbox_kernels = track_rpn_bbox_temp.reshape(
            n_boxes, 4 * self.TK, trc, temp_ksize, temp_ksize)
        track_rpn_logits, track_rpn_bbox = siamese_xcorr_dual(
            track_rpn_cls_det, cls_kernels, track_rpn_bbox_det, bbox_kernels)

        track_rpn_logits = track_rpn_logits.reshape(
            n_boxes, 2, self.TK * self.rpn_conv_size, self.rpn_conv_size)
        track_rpn_bbox = track_rpn_bbox.reshape(
            n_boxes, 4 * self.TK, self.rpn_conv_size, self.rpn_conv_size)
        # --- siamese rpn end ---

        # --- Fast RCNN start ---
        detect_rpn_logits, detect_rpn_bbox = self._rpn(self.params['detect_rpn'], batch_x)
        detect_rpn_logits = detect_rpn_logits.reshape(
            2 * self.batch_size, 2, self.K * self.out_size[1], self.out_size[0])
        all_proposals = self.gen_proposals(detect_rpn_logits, detect_rpn_bbox,
                                           det_anchors, 2 * self.batch_size)

        # TODO(synk): U.get_boxes_classes_list stand-in (per-image gt lists)
        gt_boxes = temp_box_list + det_box_list
        gt_classes = temp_classes_list + det_classes_list

        (proposals, proposal_cls_targets, proposal_bbox_targets,
         bbox_weights, labels) = self._proposal_targets(all_proposals)

        num_proposals_per_image = [int(label.shape[0]) for label in labels]
        # fg labels are statically known constants: no device->host sync.
        num_fgs = CFG.NUM_FG_PER_IMAGE * len(labels)

        roi_features = self.get_rois(batch_x, proposals, num_proposals_per_image)
        frcnn_logits, _, frcnn_bbox = self.fastRCNN(roi_features)
        frcnn_bbox = frcnn_bbox * bbox_weights
        # --- Fast RCNN end ---

        output = {}
        output['track_rpn_logits'] = track_rpn_logits
        output['track_rpn_bbox'] = track_rpn_bbox
        output['detect_rpn_logits'] = detect_rpn_logits
        output['detect_rpn_bbox'] = detect_rpn_bbox
        output['frcnn_bbox'] = frcnn_bbox
        output['frcnn_cls_target'] = proposal_cls_targets.astype(jnp.int32)
        output['frcnn_bbox_target'] = proposal_bbox_targets.astype(jnp.float32)
        output['num_proposals'] = num_proposals_per_image
        output['frcnn_logits'] = frcnn_logits
        output['num_fgs'] = num_fgs
        output['labels'] = labels
        output['gt_boxes'] = gt_boxes
        output['search_boxes'] = self.search_boxes
        output['best_inds'] = self.best_inds
        output['temp_boxes4siamese'] = self.temp_boxes4siamese
        output['det_boxes4siamese'] = self.det_boxes4siamese
        output['search_boxes4siamese'] = self.search_boxes4siamese
        output['track_anchors'] = self.track_anchors
        output['gt_classes'] = gt_classes
        return output


# ----------------------------- driver -----------------------------------------
if __name__ == "__main__":
    cfg = CFG
    key = jax.random.PRNGKey(0)
    model = MotFRCNN(cfg.IM_W, cfg.IM_H)
    out_w, out_h = model.out_size
    anchors = make_anchors(out_h, out_w, cfg.STRIDE, cfg.RATIOS, cfg.SCALES)  # (K*H'*W', 4)

    roidbs = []
    for i in range(cfg.BATCH_SIZE):
        key, k1, k2 = jax.random.split(key, 3)
        temp_image = jax.random.normal(k1, (1, cfg.IM_H, cfg.IM_W, 3), jnp.float32)
        det_image = jax.random.normal(k2, (1, cfg.IM_H, cfg.IM_W, 3), jnp.float32)
        temp_boxes = jnp.array([[4.0 + i, 4.0, 20.0, 20.0],
                                [8.0, 8.0 + i, 28.0, 24.0]], jnp.float32)
        det_boxes = temp_boxes + 2.0
        search_boxes = jnp.array([[2.0, 2.0, 26.0, 26.0],
                                  [4.0, 4.0, 30.0, 30.0]], jnp.float32)
        roidbs.append(dict(
            temp_image=temp_image, det_image=det_image,
            temp_boxes4det=temp_boxes, det_boxes4det=det_boxes,
            temp_classes=jnp.array([1, 1], jnp.int32),
            det_classes=jnp.array([1, 1], jnp.int32),
            search_boxes=search_boxes,
            temp_boxes=temp_boxes, det_boxes=det_boxes,
            best_ind=i % 2,
            best_anchors=jnp.array([[0.0, 0.0, 16.0, 16.0]] * model.TK, jnp.float32),
            anchors=anchors))

    out = model.forward(roidbs)
    jax.block_until_ready(out['track_rpn_logits'])
    jax.block_until_ready(out['track_rpn_bbox'])
    jax.block_until_ready(out['detect_rpn_logits'])
    jax.block_until_ready(out['detect_rpn_bbox'])
    jax.block_until_ready(out['frcnn_logits'])
    jax.block_until_ready(out['frcnn_bbox'])

    n = cfg.BATCH_SIZE
    assert out['track_rpn_logits'].shape == (n, 2, model.TK * cfg.RPN_CONV_SIZE, cfg.RPN_CONV_SIZE)
    assert out['track_rpn_bbox'].shape == (n, 4 * model.TK, cfg.RPN_CONV_SIZE, cfg.RPN_CONV_SIZE)
    assert out['detect_rpn_logits'].shape == (2 * n, 2, model.K * model.out_size[1], model.out_size[0])
    assert out['detect_rpn_bbox'].shape == (2 * n, 4 * model.K, model.out_size[1], model.out_size[0])
    assert out['frcnn_logits'].shape[1] == cfg.NUM_CLASSES
    assert out['frcnn_bbox'].shape[1] == 4 * cfg.NUM_CLASSES

    print("KERNEL_OK")
</pallas_src>

<mosaic_0001>
module attributes {stable_mosaic.version = 11 : i64} {
  func.func @_mm_kernel(%arg0: i32, %arg1: memref<1024x27xf32, #tpu.memory_space<vmem>>, %arg2: memref<27x32xf32, #tpu.memory_space<vmem>>, %arg3: memref<1x32xf32, #tpu.memory_space<vmem>>, %arg4: memref<1024x32xf32, #tpu.memory_space<vmem>>) attributes {dimension_semantics = [#tpu.dimension_semantics<parallel>], iteration_bounds = array<i64: 1>, scalar_prefetch = 0 : i64, scratch_operands = 0 : i64, tpu.core_type = #tpu.core_type<tc>, window_params = [{transform_indices = @transform_0, window_bounds = array<i64: 1024, 27>}, {pipeline_mode = #tpu.pipeline_mode<synchronous>, transform_indices = @transform_1, window_bounds = array<i64: 27, 32>}, {pipeline_mode = #tpu.pipeline_mode<synchronous>, transform_indices = @transform_2, window_bounds = array<i64: 1, 32>}, {transform_indices = @transform_3, window_bounds = array<i64: 1024, 32>}]} {
    %c0 = arith.constant 0 : index
    %c0_0 = arith.constant 0 : index
    %0 = vector.load %arg1[%c0, %c0_0] : memref<1024x27xf32, #tpu.memory_space<vmem>>, vector<1024x27xf32>
    %1 = arith.truncf %0 : vector<1024x27xf32> to vector<1024x27xbf16>
    %c0_1 = arith.constant 0 : index
    %c0_2 = arith.constant 0 : index
    %2 = vector.load %arg2[%c0_1, %c0_2] : memref<27x32xf32, #tpu.memory_space<vmem>>, vector<27x32xf32>
    %3 = arith.truncf %2 : vector<27x32xf32> to vector<27x32xbf16>
    %cst = arith.constant dense<0.000000e+00> : vector<1024x32xf32>
    %4 = tpu.matmul %1, %3, %cst {dimension_numbers = #tpu.dot_dimension_numbers<[1], [0], [0], [1], [0, 0, 1, 1], [], []>} : vector<1024x27xbf16>, vector<27x32xbf16>, vector<1024x32xf32> -> vector<1024x32xf32>
    %c0_3 = arith.constant 0 : index
    %c0_4 = arith.constant 0 : index
    %5 = vector.load %arg3[%c0_3, %c0_4] : memref<1x32xf32, #tpu.memory_space<vmem>>, vector<1x32xf32>
    %6 = vector.broadcast %5 : vector<1x32xf32> to vector<1024x32xf32>
    %7 = arith.addf %4, %6 : vector<1024x32xf32>
    %cst_5 = arith.constant 0.000000e+00 : f32
    %8 = vector.broadcast %cst_5 : f32 to vector<1024x32xf32>
    %9 = arith.maximumf %7, %8 : vector<1024x32xf32>
    %c0_6 = arith.constant 0 : index
    %c0_7 = arith.constant 0 : index
    %10 = vector.load %arg4[%c0_6, %c0_7] : memref<1024x32xf32, #tpu.memory_space<vmem>>, vector<1024x32xf32>
    tpu.vector_store %arg4[%c0_6, %c0_7], %9 {strides = array<i32>} : memref<1024x32xf32, #tpu.memory_space<vmem>>, vector<1024x32xf32>,
    return
  }
  func.func @transform_0(%arg0: i32) -> (i32, i32) {
    %c0_i32 = arith.constant 0 : i32
    %c0_i32_0 = arith.constant 0 : i32
    return %arg0, %c0_i32 : i32, i32
  }
  func.func @transform_1(%arg0: i32) -> (i32, i32) {
    %c0_i32 = arith.constant 0 : i32
    %c0_i32_0 = arith.constant 0 : i32
    %c0_i32_1 = arith.constant 0 : i32
    return %c0_i32, %c0_i32_0 : i32, i32
  }
  func.func @transform_2(%arg0: i32) -> (i32, i32) {
    %c0_i32 = arith.constant 0 : i32
    %c0_i32_0 = arith.constant 0 : i32
    %c0_i32_1 = arith.constant 0 : i32
    return %c0_i32, %c0_i32_0 : i32, i32
  }
  func.func @transform_3(%arg0: i32) -> (i32, i32) {
    %c0_i32 = arith.constant 0 : i32
    %c0_i32_0 = arith.constant 0 : i32
    return %arg0, %c0_i32 : i32, i32
  }
}

</mosaic_0001>

<llo_original>
// kernel: tpu_custom_call.1
$region0: #{tpu_custom_call.1}
  #allocation0 [shape = 'u32[]', space=smem, size = 0x4, offset = 0x4, fixed_abs, tag = 'smem constant byte address 0x4 - core index']
  #allocation1 [shape = 'u32[144,128]{1,0:T(1,128)}', space=vmem, size = 0x12000, scoped, tag = 'internal scratch']
  %s0 = inlined_call_operand.vmem [shape: f32[1024,27], index: 0, kind: input, shape index: {}]
  %s1 = inlined_call_operand.vmem [shape: f32[27,32], index: 1, kind: input, shape index: {}]
  %s2 = inlined_call_operand.vmem [shape: f32[1,32], index: 2, kind: input, shape index: {}]
  %s3 = inlined_call_operand.vmem [shape: f32[1024,32], index: 3, kind: output, shape index: {}]
  %s4 = sld [smem:[#allocation0]]
  $region22: #{tpu_custom_call.1} parent=0
    _
  %s6 = ssub.s32 1, %s4
  %s7 = scalar_select 0, %s6, %s4
  // Predicated region
  $region2: #{tpu_custom_call.1} parent=0 // pred_check
    _
  $region3: #{tpu_custom_call.1} parent=0 // pred_check_branch
    %9 = sbr.rel (0) target = $region5
  $region4: #{tpu_custom_call.1} parent=0 // pred_region
    _
  $region5: #{tpu_custom_call.1} parent=0 // pred_fallthru
    _
  // Predicated region
  $region6: #{tpu_custom_call.1} parent=0 // pred_check
    _
  $region7: #{tpu_custom_call.1} parent=0 // pred_check_branch
    %11 = sbr.rel (0) target = $region9
  $region8: #{tpu_custom_call.1} parent=0 // pred_region
    _
  $region9: #{tpu_custom_call.1} parent=0 // pred_fallthru
    _
  // Predicated region
  $region10: #{tpu_custom_call.1} parent=0 // pred_check
    _
  $region11: #{tpu_custom_call.1} parent=0 // pred_check_branch
    %13 = sbr.rel (0) target = $region13
  $region12: #{tpu_custom_call.1} parent=0 // pred_region
    _
  $region13: #{tpu_custom_call.1} parent=0 // pred_fallthru
    _
  %v15 = vld [vmem:[%s0] sm:$0xff]
  %v16 = vld [vmem:[%s0 + $0x8] sm:$0xff]
  %v17 = vld [vmem:[%s0 + $0x10] sm:$0xff]
  %v18 = vld [vmem:[%s0 + $0x18] sm:$0xff]
  %v19 = vld [vmem:[%s0 + $0x20] sm:$0xff]
  %v20 = vld [vmem:[%s0 + $0x28] sm:$0xff]
  %v21 = vld [vmem:[%s0 + $0x30] sm:$0xff]
  %v22 = vld [vmem:[%s0 + $0x38] sm:$0xff]
  %v23 = vld [vmem:[%s0 + $0x40] sm:$0xff]
  %v24 = vld [vmem:[%s0 + $0x48] sm:$0xff]
  %v25 = vld [vmem:[%s0 + $0x50] sm:$0xff]
  %v26 = vld [vmem:[%s0 + $0x58] sm:$0xff]
  %v27 = vld [vmem:[%s0 + $0x60] sm:$0xff]
  %v28 = vld [vmem:[%s0 + $0x68] sm:$0xff]
  %v29 = vld [vmem:[%s0 + $0x70] sm:$0xff]
  %v30 = vld [vmem:[%s0 + $0x78] sm:$0xff]
  %v31 = vld [vmem:[%s0 + $0x80] sm:$0xff]
  %v32 = vld [vmem:[%s0 + $0x88] sm:$0xff]
  %v33 = vld [vmem:[%s0 + $0x90] sm:$0xff]
  %v34 = vld [vmem:[%s0 + $0x98] sm:$0xff]
  %v35 = vld [vmem:[%s0 + $0xa0] sm:$0xff]
  %v36 = vld [vmem:[%s0 + $0xa8] sm:$0xff]
  %v37 = vld [vmem:[%s0 + $0xb0] sm:$0xff]
  %v38 = vld [vmem:[%s0 + $0xb8] sm:$0xff]
  %v39 = vld [vmem:[%s0 + $0xc0] sm:$0xff]
  %v40 = vld [vmem:[%s0 + $0xc8] sm:$0xff]
  %v41 = vld [vmem:[%s0 + $0xd0] sm:$0xff]
  %v42 = vld [vmem:[%s0 + $0xd8] sm:$0xff]
  %v43 = vld [vmem:[%s0 + $0xe0] sm:$0xff]
  %v44 = vld [vmem:[%s0 + $0xe8] sm:$0xff]
  %v45 = vld [vmem:[%s0 + $0xf0] sm:$0xff]
  %v46 = vld [vmem:[%s0 + $0xf8] sm:$0xff]
  %v47 = vld [vmem:[%s0 + $0x100] sm:$0xff]
  %v48 = vld [vmem:[%s0 + $0x108] sm:$0xff]
  %v49 = vld [vmem:[%s0 + $0x110] sm:$0xff]
  %v50 = vld [vmem:[%s0 + $0x118] sm:$0xff]
  %v51 = vld [vmem:[%s0 + $0x120] sm:$0xff]
  %v52 = vld [vmem:[%s0 + $0x128] sm:$0xff]
  %v53 = vld [vmem:[%s0 + $0x130] sm:$0xff]
  %v54 = vld [vmem:[%s0 + $0x138] sm:$0xff]
  %v55 = vld [vmem:[%s0 + $0x140] sm:$0xff]
  %v56 = vld [vmem:[%s0 + $0x148] sm:$0xff]
  %v57 = vld [vmem:[%s0 + $0x150] sm:$0xff]
  %v58 = vld [vmem:[%s0 + $0x158] sm:$0xff]
  %v59 = vld [vmem:[%s0 + $0x160] sm:$0xff]
  %v60 = vld [vmem:[%s0 + $0x168] sm:$0xff]
  %v61 = vld [vmem:[%s0 + $0x170] sm:$0xff]
  %v62 = vld [vmem:[%s0 + $0x178] sm:$0xff]
  %v63 = vld [vmem:[%s0 + $0x180] sm:$0xff]
  %v64 = vld [vmem:[%s0 + $0x188] sm:$0xff]
  %v65 = vld [vmem:[%s0 + $0x190] sm:$0xff]
  %v66 = vld [vmem:[%s0 + $0x198] sm:$0xff]
  %v67 = vld [vmem:[%s0 + $0x1a0] sm:$0xff]
  %v68 = vld [vmem:[%s0 + $0x1a8] sm:$0xff]
  %v69 = vld [vmem:[%s0 + $0x1b0] sm:$0xff]
  %v70 = vld [vmem:[%s0 + $0x1b8] sm:$0xff]
  %v71 = vld [vmem:[%s0 + $0x1c0] sm:$0xff]
  %v72 = vld [vmem:[%s0 + $0x1c8] sm:$0xff]
  %v73 = vld [vmem:[%s0 + $0x1d0] sm:$0xff]
  %v74 = vld [vmem:[%s0 + $0x1d8] sm:$0xff]
  %v75 = vld [vmem:[%s0 + $0x1e0] sm:$0xff]
  %v76 = vld [vmem:[%s0 + $0x1e8] sm:$0xff]
  %v77 = vld [vmem:[%s0 + $0x1f0] sm:$0xff]
  %v78 = vld [vmem:[%s0 + $0x1f8] sm:$0xff]
  %v79 = vld [vmem:[%s0 + $0x200] sm:$0xff]
  %v80 = vld [vmem:[%s0 + $0x208] sm:$0xff]
  %v81 = vld [vmem:[%s0 + $0x210] sm:$0xff]
  %v82 = vld [vmem:[%s0 + $0x218] sm:$0xff]
  %v83 = vld [vmem:[%s0 + $0x220] sm:$0xff]
  %v84 = vld [vmem:[%s0 + $0x228] sm:$0xff]
  %v85 = vld [vmem:[%s0 + $0x230] sm:$0xff]
  %v86 = vld [vmem:[%s0 + $0x238] sm:$0xff]
  %v87 = vld [vmem:[%s0 + $0x240] sm:$0xff]
  %v88 = vld [vmem:[%s0 + $0x248] sm:$0xff]
  %v89 = vld [vmem:[%s0 + $0x250] sm:$0xff]
  %v90 = vld [vmem:[%s0 + $0x258] sm:$0xff]
  %v91 = vld [vmem:[%s0 + $0x260] sm:$0xff]
  %v92 = vld [vmem:[%s0 + $0x268] sm:$0xff]
  %v93 = vld [vmem:[%s0 + $0x270] sm:$0xff]
  %v94 = vld [vmem:[%s0 + $0x278] sm:$0xff]
  %v95 = vld [vmem:[%s0 + $0x280] sm:$0xff]
  %v96 = vld [vmem:[%s0 + $0x288] sm:$0xff]
  %v97 = vld [vmem:[%s0 + $0x290] sm:$0xff]
  %v98 = vld [vmem:[%s0 + $0x298] sm:$0xff]
  %v99 = vld [vmem:[%s0 + $0x2a0] sm:$0xff]
  %v100 = vld [vmem:[%s0 + $0x2a8] sm:$0xff]
  %v101 = vld [vmem:[%s0 + $0x2b0] sm:$0xff]
  %v102 = vld [vmem:[%s0 + $0x2b8] sm:$0xff]
  %v103 = vld [vmem:[%s0 + $0x2c0] sm:$0xff]
  %v104 = vld [vmem:[%s0 + $0x2c8] sm:$0xff]
  %v105 = vld [vmem:[%s0 + $0x2d0] sm:$0xff]
  %v106 = vld [vmem:[%s0 + $0x2d8] sm:$0xff]
  %v107 = vld [vmem:[%s0 + $0x2e0] sm:$0xff]
  %v108 = vld [vmem:[%s0 + $0x2e8] sm:$0xff]
  %v109 = vld [vmem:[%s0 + $0x2f0] sm:$0xff]
  %v110 = vld [vmem:[%s0 + $0x2f8] sm:$0xff]
  %v111 = vld [vmem:[%s0 + $0x300] sm:$0xff]
  %v112 = vld [vmem:[%s0 + $0x308] sm:$0xff]
  %v113 = vld [vmem:[%s0 + $0x310] sm:$0xff]
  %v114 = vld [vmem:[%s0 + $0x318] sm:$0xff]
  %v115 = vld [vmem:[%s0 + $0x320] sm:$0xff]
  %v116 = vld [vmem:[%s0 + $0x328] sm:$0xff]
  %v117 = vld [vmem:[%s0 + $0x330] sm:$0xff]
  %v118 = vld [vmem:[%s0 + $0x338] sm:$0xff]
  %v119 = vld [vmem:[%s0 + $0x340] sm:$0xff]
  %v120 = vld [vmem:[%s0 + $0x348] sm:$0xff]
  %v121 = vld [vmem:[%s0 + $0x350] sm:$0xff]
  %v122 = vld [vmem:[%s0 + $0x358] sm:$0xff]
  %v123 = vld [vmem:[%s0 + $0x360] sm:$0xff]
  %v124 = vld [vmem:[%s0 + $0x368] sm:$0xff]
  %v125 = vld [vmem:[%s0 + $0x370] sm:$0xff]
  %v126 = vld [vmem:[%s0 + $0x378] sm:$0xff]
  %v127 = vld [vmem:[%s0 + $0x380] sm:$0xff]
  %v128 = vld [vmem:[%s0 + $0x388] sm:$0xff]
  %v129 = vld [vmem:[%s0 + $0x390] sm:$0xff]
  %v130 = vld [vmem:[%s0 + $0x398] sm:$0xff]
  %v131 = vld [vmem:[%s0 + $0x3a0] sm:$0xff]
  %v132 = vld [vmem:[%s0 + $0x3a8] sm:$0xff]
  %v133 = vld [vmem:[%s0 + $0x3b0] sm:$0xff]
  %v134 = vld [vmem:[%s0 + $0x3b8] sm:$0xff]
  %v135 = vld [vmem:[%s0 + $0x3c0] sm:$0xff]
  %v136 = vld [vmem:[%s0 + $0x3c8] sm:$0xff]
  %v137 = vld [vmem:[%s0 + $0x3d0] sm:$0xff]
  %v138 = vld [vmem:[%s0 + $0x3d8] sm:$0xff]
  %v139 = vld [vmem:[%s0 + $0x3e0] sm:$0xff]
  %v140 = vld [vmem:[%s0 + $0x3e8] sm:$0xff]
  %v141 = vld [vmem:[%s0 + $0x3f0] sm:$0xff]
  %v142 = vld [vmem:[%s0 + $0x3f8] sm:$0xff]
  %v143 = vpack.c.bf16 %v16, %v15
  %v144 = vpack.c.bf16 %v18, %v17
  %v145 = vpack.c.bf16 %v20, %v19
  %v146 = vpack.c.bf16 %v22, %v21
  %v147 = vpack.c.bf16 %v24, %v23
  %v148 = vpack.c.bf16 %v26, %v25
  %v149 = vpack.c.bf16 %v28, %v27
  %v150 = vpack.c.bf16 %v30, %v29
  %v151 = vpack.c.bf16 %v32, %v31
  %v152 = vpack.c.bf16 %v34, %v33
  %v153 = vpack.c.bf16 %v36, %v35
  %v154 = vpack.c.bf16 %v38, %v37
  %v155 = vpack.c.bf16 %v40, %v39
  %v156 = vpack.c.bf16 %v42, %v41
  %v157 = vpack.c.bf16 %v44, %v43
  %v158 = vpack.c.bf16 %v46, %v45
  %v159 = vpack.c.bf16 %v48, %v47
  %v160 = vpack.c.bf16 %v50, %v49
  %v161 = vpack.c.bf16 %v52, %v51
  %v162 = vpack.c.bf16 %v54, %v53
  %v163 = vpack.c.bf16 %v56, %v55
  %v164 = vpack.c.bf16 %v58, %v57
  %v165 = vpack.c.bf16 %v60, %v59
  %v166 = vpack.c.bf16 %v62, %v61
  %v167 = vpack.c.bf16 %v64, %v63
  %v168 = vpack.c.bf16 %v66, %v65
  %v169 = vpack.c.bf16 %v68, %v67
  %v170 = vpack.c.bf16 %v70, %v69
  %v171 = vpack.c.bf16 %v72, %v71
  %v172 = vpack.c.bf16 %v74, %v73
  %v173 = vpack.c.bf16 %v76, %v75
  %v174 = vpack.c.bf16 %v78, %v77
  %v175 = vpack.c.bf16 %v80, %v79
  %v176 = vpack.c.bf16 %v82, %v81
  %v177 = vpack.c.bf16 %v84, %v83
  %v178 = vpack.c.bf16 %v86, %v85
  %v179 = vpack.c.bf16 %v88, %v87
  %v180 = vpack.c.bf16 %v90, %v89
  %v181 = vpack.c.bf16 %v92, %v91
  %v182 = vpack.c.bf16 %v94, %v93
  %v183 = vpack.c.bf16 %v96, %v95
  %v184 = vpack.c.bf16 %v98, %v97
  %v185 = vpack.c.bf16 %v100, %v99
  %v186 = vpack.c.bf16 %v102, %v101
  %v187 = vpack.c.bf16 %v104, %v103
  %v188 = vpack.c.bf16 %v106, %v105
  %v189 = vpack.c.bf16 %v108, %v107
  %v190 = vpack.c.bf16 %v110, %v109
  %v191 = vpack.c.bf16 %v112, %v111
  %v192 = vpack.c.bf16 %v114, %v113
  %v193 = vpack.c.bf16 %v116, %v115
  %v194 = vpack.c.bf16 %v118, %v117
  %v195 = vpack.c.bf16 %v120, %v119
  %v196 = vpack.c.bf16 %v122, %v121
  %v197 = vpack.c.bf16 %v124, %v123
  %v198 = vpack.c.bf16 %v126, %v125
  %v199 = vpack.c.bf16 %v128, %v127
  %v200 = vpack.c.bf16 %v130, %v129
  %v201 = vpack.c.bf16 %v132, %v131
  %v202 = vpack.c.bf16 %v134, %v133
  %v203 = vpack.c.bf16 %v136, %v135
  %v204 = vpack.c.bf16 %v138, %v137
  %v205 = vpack.c.bf16 %v140, %v139
  %v206 = vpack.c.bf16 %v142, %v141
  %v207 = vld [vmem:[%s1] sm:$0xff]
  %v208 = vld [vmem:[%s1 + $0x8] sm:$0xff]
  %v209 = vld [vmem:[%s1 + $0x10] sm:$0xff]
  %v210 = vld [vmem:[%s1 + $0x18] sm:$0x7]
  %v211 = vpack.c.bf16 %v208, %v207
  %v212 = vpack.c.bf16 %v210, %v209
  %v213 = vld [vmem:[%s2] sm:$0x1]
  %v215 = vlaneseq
  %v216 = vshrl.u32 %v215, 7
  %v217 = vsub.s32 0, %v216
  %v218 = vrot.slane %v213, %v217
  %vm220 = vcmask 220160
  %v222 = vsel %vm220, %v143, 0
  %v225 = vsel %vm220, %v144, 0
  %v228 = vsel %vm220, %v145, 0
  %v231 = vsel %vm220, %v146, 0
  %v234 = vsel %vm220, %v147, 0
  %v237 = vsel %vm220, %v148, 0
  %v240 = vsel %vm220, %v149, 0
  %v243 = vsel %vm220, %v150, 0
  %v246 = vsel %vm220, %v151, 0
  %v249 = vsel %vm220, %v152, 0
  %v252 = vsel %vm220, %v153, 0
  %v255 = vsel %vm220, %v154, 0
  %v258 = vsel %vm220, %v155, 0
  %v261 = vsel %vm220, %v156, 0
  %v264 = vsel %vm220, %v157, 0
  %v267 = vsel %vm220, %v158, 0
  %v270 = vsel %vm220, %v159, 0
  %v273 = vsel %vm220, %v160, 0
  %v276 = vsel %vm220, %v161, 0
  %v279 = vsel %vm220, %v162, 0
  %v282 = vsel %vm220, %v163, 0
  %v285 = vsel %vm220, %v164, 0
  %v288 = vsel %vm220, %v165, 0
  %v291 = vsel %vm220, %v166, 0
  %v294 = vsel %vm220, %v167, 0
  %v297 = vsel %vm220, %v168, 0
  %v300 = vsel %vm220, %v169, 0
  %v303 = vsel %vm220, %v170, 0
  %v306 = vsel %vm220, %v171, 0
  %v309 = vsel %vm220, %v172, 0
  %v312 = vsel %vm220, %v173, 0
  %v315 = vsel %vm220, %v174, 0
  %v318 = vsel %vm220, %v175, 0
  %v321 = vsel %vm220, %v176, 0
  %v324 = vsel %vm220, %v177, 0
  %v327 = vsel %vm220, %v178, 0
  %v330 = vsel %vm220, %v179, 0
  %v333 = vsel %vm220, %v180, 0
  %v336 = vsel %vm220, %v181, 0
  %v339 = vsel %vm220, %v182, 0
  %v342 = vsel %vm220, %v183, 0
  %v345 = vsel %vm220, %v184, 0
  %v348 = vsel %vm220, %v185, 0
  %v351 = vsel %vm220, %v186, 0
  %v354 = vsel %vm220, %v187, 0
  %v357 = vsel %vm220, %v188, 0
  %v360 = vsel %vm220, %v189, 0
  %v363 = vsel %vm220, %v190, 0
  %v366 = vsel %vm220, %v191, 0
  %v369 = vsel %vm220, %v192, 0
  %v372 = vsel %vm220, %v193, 0
  %v375 = vsel %vm220, %v194, 0
  %v378 = vsel %vm220, %v195, 0
  %v381 = vsel %vm220, %v196, 0
  %v384 = vsel %vm220, %v197, 0
  %v387 = vsel %vm220, %v198, 0
  %v390 = vsel %vm220, %v199, 0
  %v393 = vsel %vm220, %v200, 0
  %v396 = vsel %vm220, %v201, 0
  %v399 = vsel %vm220, %v202, 0
  %v402 = vsel %vm220, %v203, 0
  %v405 = vsel %vm220, %v204, 0
  %v408 = vsel %vm220, %v205, 0
  %v411 = vsel %vm220, %v206, 0
  %vm413 = vcmask 1044480
  %vm414 = vcmask 1045504
  %v415 = vsel %vm413, 4294967295, 65535
  %v416 = vsel %vm414, %v415, 0
  %v418 = vand.u32 %v212, %v416
  %420 = vmatprep.subr.bf16.mxu0 0
  %421 = vmatpush1.bf16.msra.mxu0 %v211
  %422 = vmatprep.subr.bf16.mxu0 0
  %423 = vmatpush1.bf16.msra.mxu0 %v418
  %424 = vmatprep.subr.bf16.mxu0 0
  %425 = vmatpush1.bf16.msra.mxu0 0
  %426 = vmatprep.subr.bf16.mxu0 0
  %427 = vmatpush1.bf16.msra.mxu0 0
  %428 = vmatprep.subr.bf16.mxu0 0
  %429 = vmatpush1.bf16.msra.mxu0 0
  %430 = vmatprep.subr.bf16.mxu0 0
  %431 = vmatpush1.bf16.msra.mxu0 0
  %432 = vmatprep.subr.bf16.mxu0 0
  %433 = vmatpush1.bf16.msra.mxu0 0
  %434 = vmatprep.subr.bf16.mxu0 0
  %435 = vmatpush1.bf16.msra.mxu0 0
  %436 = vmatprep.subr.bf16.mxu0 0
  %437 = vmatpush1.bf16.msra.mxu0 0
  %438 = vmatprep.subr.bf16.mxu0 0
  %439 = vmatpush1.bf16.msra.mxu0 0
  %440 = vmatprep.subr.bf16.mxu0 0
  %441 = vmatpush1.bf16.msra.mxu0 0
  %442 = vmatprep.subr.bf16.mxu0 0
  %443 = vmatpush1.bf16.msra.mxu0 0
  %444 = vmatprep.subr.bf16.mxu0 0
  %445 = vmatpush1.bf16.msra.mxu0 0
  %446 = vmatprep.subr.bf16.mxu0 0
  %447 = vmatpush1.bf16.msra.mxu0 0
  %448 = vmatprep.subr.bf16.mxu0 0
  %449 = vmatpush1.bf16.msra.mxu0 0
  %450 = vmatprep.subr.bf16.mxu0 0
  %451 = vmatpush1.bf16.msra.mxu0 0
  %452 = vmatprep.mubr.bf16.mxu0 0
  %453 = vmatmul.mubr.bf16.gmra.mrb[0].mxu0 %v222
  %v454 = vpop.f32.mrb[0].mxu0
  %v455 = vadd.f32 %v218, %v454
  %v456 = vpop.f32.mrb[0].mxu0
  %v457 = vpop.f32.mrb[0].mxu0
  %v458 = vadd.f32 %v218, %v457
  %v459 = vpop.f32.mrb[0].mxu0
  %460 = vmatprep.mubr.bf16.mxu0 0
  %461 = vmatmul.mubr.bf16.gmra.mrb[0].mxu0 %v225
  %v462 = vpop.f32.mrb[0].mxu0
  %v463 = vadd.f32 %v218, %v462
  %v464 = vpop.f32.mrb[0].mxu0
  %v465 = vpop.f32.mrb[0].mxu0
  %v466 = vadd.f32 %v218, %v465
  %v467 = vpop.f32.mrb[0].mxu0
  %468 = vmatprep.mubr.bf16.mxu0 0
  %469 = vmatmul.mubr.bf16.gmra.mrb[0].mxu0 %v228
  %v470 = vpop.f32.mrb[0].mxu0
  %v471 = vadd.f32 %v218, %v470
  %v472 = vpop.f32.mrb[0].mxu0
  %v473 = vpop.f32.mrb[0].mxu0
  %v474 = vadd.f32 %v218, %v473
  %v475 = vpop.f32.mrb[0].mxu0
  %476 = vmatprep.mubr.bf16.mxu0 0
  %477 = vmatmul.mubr.bf16.gmra.mrb[0].mxu0 %v231
  %v478 = vpop.f32.mrb[0].mxu0
  %v479 = vadd.f32 %v218, %v478
  %v480 = vpop.f32.mrb[0].mxu0
  %v481 = vpop.f32.mrb[0].mxu0
  %v482 = vadd.f32 %v218, %v481
  %v483 = vpop.f32.mrb[0].mxu0
  %484 = vmatprep.mubr.bf16.mxu0 0
  %485 = vmatmul.mubr.bf16.gmra.mrb[0].mxu0 %v234
  %v486 = vpop.f32.mrb[0].mxu0
  %v487 = vadd.f32 %v218, %v486
  %v488 = vpop.f32.mrb[0].mxu0
  %v489 = vpop.f32.mrb[0].mxu0
  %v490 = vadd.f32 %v218, %v489
  %v491 = vpop.f32.mrb[0].mxu0
  %492 = vmatprep.mubr.bf16.mxu0 0
  %493 = vmatmul.mubr.bf16.gmra.mrb[0].mxu0 %v237
  %v494 = vpop.f32.mrb[0].mxu0
  %v495 = vadd.f32 %v218, %v494
  %v496 = vpop.f32.mrb[0].mxu0
  %v497 = vpop.f32.mrb[0].mxu0
  %v498 = vadd.f32 %v218, %v497
  %v499 = vpop.f32.mrb[0].mxu0
  %500 = vmatprep.mubr.bf16.mxu0 0
  %501 = vmatmul.mubr.bf16.gmra.mrb[0].mxu0 %v240
  %v502 = vpop.f32.mrb[0].mxu0
  %v503 = vadd.f32 %v218, %v502
  %v504 = vpop.f32.mrb[0].mxu0
  %v505 = vpop.f32.mrb[0].mxu0
  %v506 = vadd.f32 %v218, %v505
  %v507 = vpop.f32.mrb[0].mxu0
  %508 = vmatprep.mubr.bf16.mxu0 0
  %509 = vmatmul.mubr.bf16.gmra.mrb[0].mxu0 %v243
  %v510 = vpop.f32.mrb[0].mxu0
  %v511 = vadd.f32 %v218, %v510
  %v512 = vpop.f32.mrb[0].mxu0
  %v513 = vpop.f32.mrb[0].mxu0
  %v514 = vadd.f32 %v218, %v513
  %v515 = vpop.f32.mrb[0].mxu0
  %516 = vmatprep.mubr.bf16.mxu0 0
  %517 = vmatmul.mubr.bf16.gmra.mrb[0].mxu0 %v246
  %v518 = vpop.f32.mrb[0].mxu0
  %v519 = vadd.f32 %v218, %v518
  %v520 = vpop.f32.mrb[0].mxu0
  %v521 = vpop.f32.mrb[0].mxu0
  %v522 = vadd.f32 %v218, %v521
  %v523 = vpop.f32.mrb[0].mxu0
  %524 = vmatprep.mubr.bf16.mxu0 0
  %525 = vmatmul.mubr.bf16.gmra.mrb[0].mxu0 %v249
  %v526 = vpop.f32.mrb[0].mxu0
  %v527 = vadd.f32 %v218, %v526
  %v528 = vpop.f32.mrb[0].mxu0
  %v529 = vpop.f32.mrb[0].mxu0
  %v530 = vadd.f32 %v218, %v529
  %v531 = vpop.f32.mrb[0].mxu0
  %532 = vmatprep.mubr.bf16.mxu0 0
  %533 = vmatmul.mubr.bf16.gmra.mrb[0].mxu0 %v252
  %v534 = vpop.f32.mrb[0].mxu0
  %v535 = vadd.f32 %v218, %v534
  %v536 = vpop.f32.mrb[0].mxu0
  %v537 = vpop.f32.mrb[0].mxu0
  %v538 = vadd.f32 %v218, %v537
  %v539 = vpop.f32.mrb[0].mxu0
  %540 = vmatprep.mubr.bf16.mxu0 0
  %541 = vmatmul.mubr.bf16.gmra.mrb[0].mxu0 %v255
  %v542 = vpop.f32.mrb[0].mxu0
  %v543 = vadd.f32 %v218, %v542
  %v544 = vpop.f32.mrb[0].mxu0
  %v545 = vpop.f32.mrb[0].mxu0
  %v546 = vadd.f32 %v218, %v545
  %v547 = vpop.f32.mrb[0].mxu0
  %548 = vmatprep.mubr.bf16.mxu0 0
  %549 = vmatmul.mubr.bf16.gmra.mrb[0].mxu0 %v258
  %v550 = vpop.f32.mrb[0].mxu0
  %v551 = vadd.f32 %v218, %v550
  %v552 = vpop.f32.mrb[0].mxu0
  %v553 = vpop.f32.mrb[0].mxu0
  %v554 = vadd.f32 %v218, %v553
  %v555 = vpop.f32.mrb[0].mxu0
  %556 = vmatprep.mubr.bf16.mxu0 0
  %557 = vmatmul.mubr.bf16.gmra.mrb[0].mxu0 %v261
  %v558 = vpop.f32.mrb[0].mxu0
  %v559 = vadd.f32 %v218, %v558
  %v560 = vpop.f32.mrb[0].mxu0
  %v561 = vpop.f32.mrb[0].mxu0
  %v562 = vadd.f32 %v218, %v561
  %v563 = vpop.f32.mrb[0].mxu0
  %564 = vmatprep.mubr.bf16.mxu0 0
  %565 = vmatmul.mubr.bf16.gmra.mrb[0].mxu0 %v264
  %v566 = vpop.f32.mrb[0].mxu0
  %v567 = vadd.f32 %v218, %v566
  %v568 = vpop.f32.mrb[0].mxu0
  %v569 = vpop.f32.mrb[0].mxu0
  %v570 = vadd.f32 %v218, %v569
  %v571 = vpop.f32.mrb[0].mxu0
  %572 = vmatprep.mubr.bf16.mxu0 0
  %573 = vmatmul.mubr.bf16.gmra.mrb[0].mxu0 %v267
  %v574 = vpop.f32.mrb[0].mxu0
  %v575 = vadd.f32 %v218, %v574
  %v576 = vpop.f32.mrb[0].mxu0
  %v577 = vpop.f32.mrb[0].mxu0
  %v578 = vadd.f32 %v218, %v577
  %v579 = vpop.f32.mrb[0].mxu0
  %580 = vmatprep.mubr.bf16.mxu0 0
  %581 = vmatmul.mubr.bf16.gmra.mrb[0].mxu0 %v270
  %v582 = vpop.f32.mrb[0].mxu0
  %v583 = vadd.f32 %v218, %v582
  %v584 = vpop.f32.mrb[0].mxu0
  %v585 = vpop.f32.mrb[0].mxu0
  %v586 = vadd.f32 %v218, %v585
  %v587 = vpop.f32.mrb[0].mxu0
  %588 = vmatprep.mubr.bf16.mxu0 0
  %589 = vmatmul.mubr.bf16.gmra.mrb[0].mxu0 %v273
  %v590 = vpop.f32.mrb[0].mxu0
  %v591 = vadd.f32 %v218, %v590
  %v592 = vpop.f32.mrb[0].mxu0
  %v593 = vpop.f32.mrb[0].mxu0
  %v594 = vadd.f32 %v218, %v593
  %v595 = vpop.f32.mrb[0].mxu0
  %596 = vmatprep.mubr.bf16.mxu0 0
  %597 = vmatmul.mubr.bf16.gmra.mrb[0].mxu0 %v276
  %v598 = vpop.f32.mrb[0].mxu0
  %v599 = vadd.f32 %v218, %v598
  %v600 = vpop.f32.mrb[0].mxu0
  %v601 = vpop.f32.mrb[0].mxu0
  %v602 = vadd.f32 %v218, %v601
  %v603 = vpop.f32.mrb[0].mxu0
  %604 = vmatprep.mubr.bf16.mxu0 0
  %605 = vmatmul.mubr.bf16.gmra.mrb[0].mxu0 %v279
  %v606 = vpop.f32.mrb[0].mxu0
  %v607 = vadd.f32 %v218, %v606
  %v608 = vpop.f32.mrb[0].mxu0
  %v609 = vpop.f32.mrb[0].mxu0
  %v610 = vadd.f32 %v218, %v609
  %v611 = vpop.f32.mrb[0].mxu0
  %612 = vmatprep.mubr.bf16.mxu0 0
  %613 = vmatmul.mubr.bf16.gmra.mrb[0].mxu0 %v282
  %v614 = vpop.f32.mrb[0].mxu0
  %v615 = vadd.f32 %v218, %v614
  %v616 = vpop.f32.mrb[0].mxu0
  %v617 = vpop.f32.mrb[0].mxu0
  %v618 = vadd.f32 %v218, %v617
  %v619 = vpop.f32.mrb[0].mxu0
  %620 = vmatprep.mubr.bf16.mxu0 0
  %621 = vmatmul.mubr.bf16.gmra.mrb[0].mxu0 %v285
  %v622 = vpop.f32.mrb[0].mxu0
  %v623 = vadd.f32 %v218, %v622
  %v624 = vpop.f32.mrb[0].mxu0
  %v625 = vpop.f32.mrb[0].mxu0
  %v626 = vadd.f32 %v218, %v625
  %v627 = vpop.f32.mrb[0].mxu0
  %628 = vmatprep.mubr.bf16.mxu0 0
  %629 = vmatmul.mubr.bf16.gmra.mrb[0].mxu0 %v288
  %v630 = vpop.f32.mrb[0].mxu0
  %v631 = vadd.f32 %v218, %v630
  %v632 = vpop.f32.mrb[0].mxu0
  %v633 = vpop.f32.mrb[0].mxu0
  %v634 = vadd.f32 %v218, %v633
  %v635 = vpop.f32.mrb[0].mxu0
  %636 = vmatprep.mubr.bf16.mxu0 0
  %637 = vmatmul.mubr.bf16.gmra.mrb[0].mxu0 %v291
  %v638 = vpop.f32.mrb[0].mxu0
  %v639 = vadd.f32 %v218, %v638
  %v640 = vpop.f32.mrb[0].mxu0
  %v641 = vpop.f32.mrb[0].mxu0
  %v642 = vadd.f32 %v218, %v641
  %v643 = vpop.f32.mrb[0].mxu0
  %644 = vmatprep.mubr.bf16.mxu0 0
  %645 = vmatmul.mubr.bf16.gmra.mrb[0].mxu0 %v294
  %v646 = vpop.f32.mrb[0].mxu0
  %v647 = vadd.f32 %v218, %v646
  %v648 = vpop.f32.mrb[0].mxu0
  %v649 = vpop.f32.mrb[0].mxu0
  %v650 = vadd.f32 %v218, %v649
  %v651 = vpop.f32.mrb[0].mxu0
  %652 = vmatprep.mubr.bf16.mxu0 0
  %653 = vmatmul.mubr.bf16.gmra.mrb[0].mxu0 %v297
  %v654 = vpop.f32.mrb[0].mxu0
  %v655 = vadd.f32 %v218, %v654
  %v656 = vpop.f32.mrb[0].mxu0
  %v657 = vpop.f32.mrb[0].mxu0
  %v658 = vadd.f32 %v218, %v657
  %v659 = vpop.f32.mrb[0].mxu0
  %660 = vmatprep.mubr.bf16.mxu0 0
  %661 = vmatmul.mubr.bf16.gmra.mrb[0].mxu0 %v300
  %v662 = vpop.f32.mrb[0].mxu0
  %v663 = vadd.f32 %v218, %v662
  %v664 = vpop.f32.mrb[0].mxu0
  %v665 = vpop.f32.mrb[0].mxu0
  %v666 = vadd.f32 %v218, %v665
  %v667 = vpop.f32.mrb[0].mxu0
  %668 = vmatprep.mubr.bf16.mxu0 0
  %669 = vmatmul.mubr.bf16.gmra.mrb[0].mxu0 %v303
  %v670 = vpop.f32.mrb[0].mxu0
  %v671 = vadd.f32 %v218, %v670
  %v672 = vpop.f32.mrb[0].mxu0
  %v673 = vpop.f32.mrb[0].mxu0
  %v674 = vadd.f32 %v218, %v673
  %v675 = vpop.f32.mrb[0].mxu0
  %676 = vmatprep.mubr.bf16.mxu0 0
  %677 = vmatmul.mubr.bf16.gmra.mrb[0].mxu0 %v306
  %v678 = vpop.f32.mrb[0].mxu0
  %v679 = vadd.f32 %v218, %v678
  %v680 = vpop.f32.mrb[0].mxu0
  %v681 = vpop.f32.mrb[0].mxu0
  %v682 = vadd.f32 %v218, %v681
  %v683 = vpop.f32.mrb[0].mxu0
  %684 = vmatprep.mubr.bf16.mxu0 0
  %685 = vmatmul.mubr.bf16.gmra.mrb[0].mxu0 %v309
  %v686 = vpop.f32.mrb[0].mxu0
  %v687 = vadd.f32 %v218, %v686
  %v688 = vpop.f32.mrb[0].mxu0
  %v689 = vpop.f32.mrb[0].mxu0
  %v690 = vadd.f32 %v218, %v689
  %v691 = vpop.f32.mrb[0].mxu0
  %692 = vmatprep.mubr.bf16.mxu0 0
  %693 = vmatmul.mubr.bf16.gmra.mrb[0].mxu0 %v312
  %v694 = vpop.f32.mrb[0].mxu0
  %v695 = vadd.f32 %v218, %v694
  %v696 = vpop.f32.mrb[0].mxu0
  %v697 = vpop.f32.mrb[0].mxu0
  %v698 = vadd.f32 %v218, %v697
  %v699 = vpop.f32.mrb[0].mxu0
  %700 = vmatprep.mubr.bf16.mxu0 0
  %701 = vmatmul.mubr.bf16.gmra.mrb[0].mxu0 %v315
  %v702 = vpop.f32.mrb[0].mxu0
  %v703 = vadd.f32 %v218, %v702
  %v704 = vpop.f32.mrb[0].mxu0
  %v705 = vpop.f32.mrb[0].mxu0
  %v706 = vadd.f32 %v218, %v705
  %v707 = vpop.f32.mrb[0].mxu0
  %708 = vmatprep.mubr.bf16.mxu0 0
  %709 = vmatmul.mubr.bf16.gmra.mrb[0].mxu0 %v318
  %v710 = vpop.f32.mrb[0].mxu0
  %v711 = vadd.f32 %v218, %v710
  %v712 = vpop.f32.mrb[0].mxu0
  %v713 = vpop.f32.mrb[0].mxu0
  %v714 = vadd.f32 %v218, %v713
  %v715 = vpop.f32.mrb[0].mxu0
  %716 = vmatprep.mubr.bf16.mxu0 0
  %717 = vmatmul.mubr.bf16.gmra.mrb[0].mxu0 %v321
  %v718 = vpop.f32.mrb[0].mxu0
  %v719 = vadd.f32 %v218, %v718
  %v720 = vpop.f32.mrb[0].mxu0
  %v721 = vpop.f32.mrb[0].mxu0
  %v722 = vadd.f32 %v218, %v721
  %v723 = vpop.f32.mrb[0].mxu0
  %724 = vmatprep.mubr.bf16.mxu0 0
  %725 = vmatmul.mubr.bf16.gmra.mrb[0].mxu0 %v324
  %v726 = vpop.f32.mrb[0].mxu0
  %v727 = vadd.f32 %v218, %v726
  %v728 = vpop.f32.mrb[0].mxu0
  %v729 = vpop.f32.mrb[0].mxu0
  %v730 = vadd.f32 %v218, %v729
  %v731 = vpop.f32.mrb[0].mxu0
  %732 = vmatprep.mubr.bf16.mxu0 0
  %733 = vmatmul.mubr.bf16.gmra.mrb[0].mxu0 %v327
  %v734 = vpop.f32.mrb[0].mxu0
  %v735 = vadd.f32 %v218, %v734
  %v736 = vpop.f32.mrb[0].mxu0
  %v737 = vpop.f32.mrb[0].mxu0
  %v738 = vadd.f32 %v218, %v737
  %v739 = vpop.f32.mrb[0].mxu0
  %740 = vmatprep.mubr.bf16.mxu0 0
  %741 = vmatmul.mubr.bf16.gmra.mrb[0].mxu0 %v330
  %v742 = vpop.f32.mrb[0].mxu0
  %v743 = vadd.f32 %v218, %v742
  %v744 = vpop.f32.mrb[0].mxu0
  %v745 = vpop.f32.mrb[0].mxu0
  %v746 = vadd.f32 %v218, %v745
  %v747 = vpop.f32.mrb[0].mxu0
  %748 = vmatprep.mubr.bf16.mxu0 0
  %749 = vmatmul.mubr.bf16.gmra.mrb[0].mxu0 %v333
  %v750 = vpop.f32.mrb[0].mxu0
  %v751 = vadd.f32 %v218, %v750
  %v752 = vpop.f32.mrb[0].mxu0
  %v753 = vpop.f32.mrb[0].mxu0
  %v754 = vadd.f32 %v218, %v753
  %v755 = vpop.f32.mrb[0].mxu0
  %756 = vmatprep.mubr.bf16.mxu0 0
  %757 = vmatmul.mubr.bf16.gmra.mrb[0].mxu0 %v336
  %v758 = vpop.f32.mrb[0].mxu0
  %v759 = vadd.f32 %v218, %v758
  %v760 = vpop.f32.mrb[0].mxu0
  %v761 = vpop.f32.mrb[0].mxu0
  %v762 = vadd.f32 %v218, %v761
  %v763 = vpop.f32.mrb[0].mxu0
  %764 = vmatprep.mubr.bf16.mxu0 0
  %765 = vmatmul.mubr.bf16.gmra.mrb[0].mxu0 %v339
  %v766 = vpop.f32.mrb[0].mxu0
  %v767 = vadd.f32 %v218, %v766
  %v768 = vpop.f32.mrb[0].mxu0
  %v769 = vpop.f32.mrb[0].mxu0
  %v770 = vadd.f32 %v218, %v769
  %v771 = vpop.f32.mrb[0].mxu0
  %772 = vmatprep.mubr.bf16.mxu0 0
  %773 = vmatmul.mubr.bf16.gmra.mrb[0].mxu0 %v342
  %v774 = vpop.f32.mrb[0].mxu0
  %v775 = vadd.f32 %v218, %v774
  %v776 = vpop.f32.mrb[0].mxu0
  %v777 = vpop.f32.mrb[0].mxu0
  %v778 = vadd.f32 %v218, %v777
  %v779 = vpop.f32.mrb[0].mxu0
  %780 = vmatprep.mubr.bf16.mxu0 0
  %781 = vmatmul.mubr.bf16.gmra.mrb[0].mxu0 %v345
  %v782 = vpop.f32.mrb[0].mxu0
  %v783 = vadd.f32 %v218, %v782
  %v784 = vpop.f32.mrb[0].mxu0
  %v785 = vpop.f32.mrb[0].mxu0
  %v786 = vadd.f32 %v218, %v785
  %v787 = vpop.f32.mrb[0].mxu0
  %788 = vmatprep.mubr.bf16.mxu0 0
  %789 = vmatmul.mubr.bf16.gmra.mrb[0].mxu0 %v348
  %v790 = vpop.f32.mrb[0].mxu0
  %v791 = vadd.f32 %v218, %v790
  %v792 = vpop.f32.mrb[0].mxu0
  %v793 = vpop.f32.mrb[0].mxu0
  %v794 = vadd.f32 %v218, %v793
  %v795 = vpop.f32.mrb[0].mxu0
  %796 = vmatprep.mubr.bf16.mxu0 0
  %797 = vmatmul.mubr.bf16.gmra.mrb[0].mxu0 %v351
  %v798 = vpop.f32.mrb[0].mxu0
  %v799 = vadd.f32 %v218, %v798
  %v800 = vpop.f32.mrb[0].mxu0
  %v801 = vpop.f32.mrb[0].mxu0
  %v802 = vadd.f32 %v218, %v801
  %v803 = vpop.f32.mrb[0].mxu0
  %804 = vmatprep.mubr.bf16.mxu0 0
  %805 = vmatmul.mubr.bf16.gmra.mrb[0].mxu0 %v354
  %v806 = vpop.f32.mrb[0].mxu0
  %v807 = vadd.f32 %v218, %v806
  %v808 = vpop.f32.mrb[0].mxu0
  %v809 = vpop.f32.mrb[0].mxu0
  %v810 = vadd.f32 %v218, %v809
  %v811 = vpop.f32.mrb[0].mxu0
  %812 = vmatprep.mubr.bf16.mxu0 0
  %813 = vmatmul.mubr.bf16.gmra.mrb[0].mxu0 %v357
  %v814 = vpop.f32.mrb[0].mxu0
  %v815 = vadd.f32 %v218, %v814
  %v816 = vpop.f32.mrb[0].mxu0
  %v817 = vpop.f32.mrb[0].mxu0
  %v818 = vadd.f32 %v218, %v817
  %v819 = vpop.f32.mrb[0].mxu0
  %820 = vmatprep.mubr.bf16.mxu0 0
  %821 = vmatmul.mubr.bf16.gmra.mrb[0].mxu0 %v360
  %v822 = vpop.f32.mrb[0].mxu0
  %v823 = vadd.f32 %v218, %v822
  %v824 = vpop.f32.mrb[0].mxu0
  %v825 = vpop.f32.mrb[0].mxu0
  %v826 = vadd.f32 %v218, %v825
  %v827 = vpop.f32.mrb[0].mxu0
  %828 = vmatprep.mubr.bf16.mxu0 0
  %829 = vmatmul.mubr.bf16.gmra.mrb[0].mxu0 %v363
  %v830 = vpop.f32.mrb[0].mxu0
  %v831 = vadd.f32 %v218, %v830
  %v832 = vpop.f32.mrb[0].mxu0
  %v833 = vpop.f32.mrb[0].mxu0
  %v834 = vadd.f32 %v218, %v833
  %v835 = vpop.f32.mrb[0].mxu0
  %836 = vmatprep.mubr.bf16.mxu0 0
  %837 = vmatmul.mubr.bf16.gmra.mrb[0].mxu0 %v366
  %v838 = vpop.f32.mrb[0].mxu0
  %v839 = vadd.f32 %v218, %v838
  %v840 = vpop.f32.mrb[0].mxu0
  %v841 = vpop.f32.mrb[0].mxu0
  %v842 = vadd.f32 %v218, %v841
  %v843 = vpop.f32.mrb[0].mxu0
  %844 = vmatprep.mubr.bf16.mxu0 0
  %845 = vmatmul.mubr.bf16.gmra.mrb[0].mxu0 %v369
  %v846 = vpop.f32.mrb[0].mxu0
  %v847 = vadd.f32 %v218, %v846
  %v848 = vpop.f32.mrb[0].mxu0
  %v849 = vpop.f32.mrb[0].mxu0
  %v850 = vadd.f32 %v218, %v849
  %v851 = vpop.f32.mrb[0].mxu0
  %852 = vmatprep.mubr.bf16.mxu0 0
  %853 = vmatmul.mubr.bf16.gmra.mrb[0].mxu0 %v372
  %v854 = vpop.f32.mrb[0].mxu0
  %v855 = vadd.f32 %v218, %v854
  %v856 = vpop.f32.mrb[0].mxu0
  %v857 = vpop.f32.mrb[0].mxu0
  %v858 = vadd.f32 %v218, %v857
  %v859 = vpop.f32.mrb[0].mxu0
  %860 = vmatprep.mubr.bf16.mxu0 0
  %861 = vmatmul.mubr.bf16.gmra.mrb[0].mxu0 %v375
  %v862 = vpop.f32.mrb[0].mxu0
  %v863 = vadd.f32 %v218, %v862
  %v864 = vpop.f32.mrb[0].mxu0
  %v865 = vpop.f32.mrb[0].mxu0
  %v866 = vadd.f32 %v218, %v865
  %v867 = vpop.f32.mrb[0].mxu0
  %868 = vmatprep.mubr.bf16.mxu0 0
  %869 = vmatmul.mubr.bf16.gmra.mrb[0].mxu0 %v378
  %v870 = vpop.f32.mrb[0].mxu0
  %v871 = vadd.f32 %v218, %v870
  %v872 = vpop.f32.mrb[0].mxu0
  %v873 = vpop.f32.mrb[0].mxu0
  %v874 = vadd.f32 %v218, %v873
  %v875 = vpop.f32.mrb[0].mxu0
  %876 = vmatprep.mubr.bf16.mxu0 0
  %877 = vmatmul.mubr.bf16.gmra.mrb[0].mxu0 %v381
  %v878 = vpop.f32.mrb[0].mxu0
  %v879 = vadd.f32 %v218, %v878
  %v880 = vpop.f32.mrb[0].mxu0
  %v881 = vpop.f32.mrb[0].mxu0
  %v882 = vadd.f32 %v218, %v881
  %v883 = vpop.f32.mrb[0].mxu0
  %884 = vmatprep.mubr.bf16.mxu0 0
  %885 = vmatmul.mubr.bf16.gmra.mrb[0].mxu0 %v384
  %v886 = vpop.f32.mrb[0].mxu0
  %v887 = vadd.f32 %v218, %v886
  %v888 = vpop.f32.mrb[0].mxu0
  %v889 = vpop.f32.mrb[0].mxu0
  %v890 = vadd.f32 %v218, %v889
  %v891 = vpop.f32.mrb[0].mxu0
  %892 = vmatprep.mubr.bf16.mxu0 0
  %893 = vmatmul.mubr.bf16.gmra.mrb[0].mxu0 %v387
  %v894 = vpop.f32.mrb[0].mxu0
  %v895 = vadd.f32 %v218, %v894
  %v896 = vpop.f32.mrb[0].mxu0
  %v897 = vpop.f32.mrb[0].mxu0
  %v898 = vadd.f32 %v218, %v897
  %v899 = vpop.f32.mrb[0].mxu0
  %900 = vmatprep.mubr.bf16.mxu0 0
  %901 = vmatmul.mubr.bf16.gmra.mrb[0].mxu0 %v390
  %v902 = vpop.f32.mrb[0].mxu0
  %v903 = vadd.f32 %v218, %v902
  %v904 = vpop.f32.mrb[0].mxu0
  %v905 = vpop.f32.mrb[0].mxu0
  %v906 = vadd.f32 %v218, %v905
  %v907 = vpop.f32.mrb[0].mxu0
  %908 = vmatprep.mubr.bf16.mxu0 0
  %909 = vmatmul.mubr.bf16.gmra.mrb[0].mxu0 %v393
  %v910 = vpop.f32.mrb[0].mxu0
  %v911 = vadd.f32 %v218, %v910
  %v912 = vpop.f32.mrb[0].mxu0
  %v913 = vpop.f32.mrb[0].mxu0
  %v914 = vadd.f32 %v218, %v913
  %v915 = vpop.f32.mrb[0].mxu0
  %916 = vmatprep.mubr.bf16.mxu0 0
  %917 = vmatmul.mubr.bf16.gmra.mrb[0].mxu0 %v396
  %v918 = vpop.f32.mrb[0].mxu0
  %v919 = vadd.f32 %v218, %v918
  %v920 = vpop.f32.mrb[0].mxu0
  %v921 = vpop.f32.mrb[0].mxu0
  %v922 = vadd.f32 %v218, %v921
  %v923 = vpop.f32.mrb[0].mxu0
  %924 = vmatprep.mubr.bf16.mxu0 0
  %925 = vmatmul.mubr.bf16.gmra.mrb[0].mxu0 %v399
  %v926 = vpop.f32.mrb[0].mxu0
  %v927 = vadd.f32 %v218, %v926
  %v928 = vpop.f32.mrb[0].mxu0
  %v929 = vpop.f32.mrb[0].mxu0
  %v930 = vadd.f32 %v218, %v929
  %v931 = vpop.f32.mrb[0].mxu0
  %932 = vmatprep.mubr.bf16.mxu0 0
  %933 = vmatmul.mubr.bf16.gmra.mrb[0].mxu0 %v402
  %v934 = vpop.f32.mrb[0].mxu0
  %v935 = vadd.f32 %v218, %v934
  %v936 = vpop.f32.mrb[0].mxu0
  %v937 = vpop.f32.mrb[0].mxu0
  %v938 = vadd.f32 %v218, %v937
  %v939 = vpop.f32.mrb[0].mxu0
  %940 = vmatprep.mubr.bf16.mxu0 0
  %941 = vmatmul.mubr.bf16.gmra.mrb[0].mxu0 %v405
  %v942 = vpop.f32.mrb[0].mxu0
  %v943 = vadd.f32 %v218, %v942
  %v944 = vpop.f32.mrb[0].mxu0
  %v945 = vpop.f32.mrb[0].mxu0
  %v946 = vadd.f32 %v218, %v945
  %v947 = vpop.f32.mrb[0].mxu0
  %948 = vmatprep.mubr.bf16.mxu0 0
  %949 = vmatmul.mubr.bf16.gmra.mrb[0].mxu0 %v408
  %v950 = vpop.f32.mrb[0].mxu0
  %v951 = vadd.f32 %v218, %v950
  %v952 = vpop.f32.mrb[0].mxu0
  %v953 = vpop.f32.mrb[0].mxu0
  %v954 = vadd.f32 %v218, %v953
  %v955 = vpop.f32.mrb[0].mxu0
  %956 = vmatprep.mubr.bf16.mxu0 0
  %957 = vmatmul.mubr.bf16.gmra.mrb[0].mxu0 %v411
  %v958 = vpop.f32.mrb[0].mxu0
  %v959 = vadd.f32 %v218, %v958
  %v960 = vpop.f32.mrb[0].mxu0
  %v961 = vpop.f32.mrb[0].mxu0
  %v962 = vadd.f32 %v218, %v961
  %v963 = vpop.f32.mrb[0].mxu0
  %964 = vdwg.mxu0
  %v965 = vmax.f32 %v455, 0.0
  %v966 = vmax.f32 %v458, 0.0
  %v967 = vmax.f32 %v463, 0.0
  %v968 = vmax.f32 %v466, 0.0
  %v969 = vmax.f32 %v471, 0.0
  %v970 = vmax.f32 %v474, 0.0
  %v971 = vmax.f32 %v479, 0.0
  %v972 = vmax.f32 %v482, 0.0
  %v973 = vmax.f32 %v487, 0.0
  %v974 = vmax.f32 %v490, 0.0
  %v975 = vmax.f32 %v495, 0.0
  %v976 = vmax.f32 %v498, 0.0
  %v977 = vmax.f32 %v503, 0.0
  %v978 = vmax.f32 %v506, 0.0
  %v979 = vmax.f32 %v511, 0.0
  %v980 = vmax.f32 %v514, 0.0
  %v981 = vmax.f32 %v519, 0.0
  %v982 = vmax.f32 %v522, 0.0
  %v983 = vmax.f32 %v527, 0.0
  %v984 = vmax.f32 %v530, 0.0
  %v985 = vmax.f32 %v535, 0.0
  %v986 = vmax.f32 %v538, 0.0
  %v987 = vmax.f32 %v543, 0.0
  %v988 = vmax.f32 %v546, 0.0
  %v989 = vmax.f32 %v551, 0.0
  %v990 = vmax.f32 %v554, 0.0
  %v991 = vmax.f32 %v559, 0.0
  %v992 = vmax.f32 %v562, 0.0
  %v993 = vmax.f32 %v567, 0.0
  %v994 = vmax.f32 %v570, 0.0
  %v995 = vmax.f32 %v575, 0.0
  %v996 = vmax.f32 %v578, 0.0
  %v997 = vmax.f32 %v583, 0.0
  %v998 = vmax.f32 %v586, 0.0
  %v999 = vmax.f32 %v591, 0.0
  %v1000 = vmax.f32 %v594, 0.0
  %v1001 = vmax.f32 %v599, 0.0
  %v1002 = vmax.f32 %v602, 0.0
  %v1003 = vmax.f32 %v607, 0.0
  %v1004 = vmax.f32 %v610, 0.0
  %v1005 = vmax.f32 %v615, 0.0
  %v1006 = vmax.f32 %v618, 0.0
  %v1007 = vmax.f32 %v623, 0.0
  %v1008 = vmax.f32 %v626, 0.0
  %v1009 = vmax.f32 %v631, 0.0
  %v1010 = vmax.f32 %v634, 0.0
  %v1011 = vmax.f32 %v639, 0.0
  %v1012 = vmax.f32 %v642, 0.0
  %v1013 = vmax.f32 %v647, 0.0
  %v1014 = vmax.f32 %v650, 0.0
  %v1015 = vmax.f32 %v655, 0.0
  %v1016 = vmax.f32 %v658, 0.0
  %v1017 = vmax.f32 %v663, 0.0
  %v1018 = vmax.f32 %v666, 0.0
  %v1019 = vmax.f32 %v671, 0.0
  %v1020 = vmax.f32 %v674, 0.0
  %v1021 = vmax.f32 %v679, 0.0
  %v1022 = vmax.f32 %v682, 0.0
  %v1023 = vmax.f32 %v687, 0.0
  %v1024 = vmax.f32 %v690, 0.0
  %v1025 = vmax.f32 %v695, 0.0
  %v1026 = vmax.f32 %v698, 0.0
  %v1027 = vmax.f32 %v703, 0.0
  %v1028 = vmax.f32 %v706, 0.0
  %v1029 = vmax.f32 %v711, 0.0
  %v1030 = vmax.f32 %v714, 0.0
  %v1031 = vmax.f32 %v719, 0.0
  %v1032 = vmax.f32 %v722, 0.0
  %v1033 = vmax.f32 %v727, 0.0
  %v1034 = vmax.f32 %v730, 0.0
  %v1035 = vmax.f32 %v735, 0.0
  %v1036 = vmax.f32 %v738, 0.0
  %v1037 = vmax.f32 %v743, 0.0
  %v1038 = vmax.f32 %v746, 0.0
  %v1039 = vmax.f32 %v751, 0.0
  %v1040 = vmax.f32 %v754, 0.0
  %v1041 = vmax.f32 %v759, 0.0
  %v1042 = vmax.f32 %v762, 0.0
  %v1043 = vmax.f32 %v767, 0.0
  %v1044 = vmax.f32 %v770, 0.0
  %v1045 = vmax.f32 %v775, 0.0
  %v1046 = vmax.f32 %v778, 0.0
  %v1047 = vmax.f32 %v783, 0.0
  %v1048 = vmax.f32 %v786, 0.0
  %v1049 = vmax.f32 %v791, 0.0
  %v1050 = vmax.f32 %v794, 0.0
  %v1051 = vmax.f32 %v799, 0.0
  %v1052 = vmax.f32 %v802, 0.0
  %v1053 = vmax.f32 %v807, 0.0
  %v1054 = vmax.f32 %v810, 0.0
  %v1055 = vmax.f32 %v815, 0.0
  %v1056 = vmax.f32 %v818, 0.0
  %v1057 = vmax.f32 %v823, 0.0
  %v1058 = vmax.f32 %v826, 0.0
  %v1059 = vmax.f32 %v831, 0.0
  %v1060 = vmax.f32 %v834, 0.0
  %v1061 = vmax.f32 %v839, 0.0
  %v1062 = vmax.f32 %v842, 0.0
  %v1063 = vmax.f32 %v847, 0.0
  %v1064 = vmax.f32 %v850, 0.0
  %v1065 = vmax.f32 %v855, 0.0
  %v1066 = vmax.f32 %v858, 0.0
  %v1067 = vmax.f32 %v863, 0.0
  %v1068 = vmax.f32 %v866, 0.0
  %v1069 = vmax.f32 %v871, 0.0
  %v1070 = vmax.f32 %v874, 0.0
  %v1071 = vmax.f32 %v879, 0.0
  %v1072 = vmax.f32 %v882, 0.0
  %v1073 = vmax.f32 %v887, 0.0
  %v1074 = vmax.f32 %v890, 0.0
  %v1075 = vmax.f32 %v895, 0.0
  %v1076 = vmax.f32 %v898, 0.0
  %v1077 = vmax.f32 %v903, 0.0
  %v1078 = vmax.f32 %v906, 0.0
  %v1079 = vmax.f32 %v911, 0.0
  %v1080 = vmax.f32 %v914, 0.0
  %v1081 = vmax.f32 %v919, 0.0
  %v1082 = vmax.f32 %v922, 0.0
  %v1083 = vmax.f32 %v927, 0.0
  %v1084 = vmax.f32 %v930, 0.0
  %v1085 = vmax.f32 %v935, 0.0
  %v1086 = vmax.f32 %v938, 0.0
  %v1087 = vmax.f32 %v943, 0.0
  %v1088 = vmax.f32 %v946, 0.0
  %v1089 = vmax.f32 %v951, 0.0
  %v1090 = vmax.f32 %v954, 0.0
  %v1091 = vmax.f32 %v959, 0.0
  %v1092 = vmax.f32 %v962, 0.0
  %vm1093 = vcmask 261120
  %1094 = vst.msk [vmem:[%s3] sm:$0xff] %vm1093, %v965
  %1095 = vst.msk [vmem:[%s3 + $0x8] sm:$0xff] %vm1093, %v966
  %1096 = vst.msk [vmem:[%s3 + $0x10] sm:$0xff] %vm1093, %v967
  %1097 = vst.msk [vmem:[%s3 + $0x18] sm:$0xff] %vm1093, %v968
  %1098 = vst.msk [vmem:[%s3 + $0x20] sm:$0xff] %vm1093, %v969
  %1099 = vst.msk [vmem:[%s3 + $0x28] sm:$0xff] %vm1093, %v970
  %1100 = vst.msk [vmem:[%s3 + $0x30] sm:$0xff] %vm1093, %v971
  %1101 = vst.msk [vmem:[%s3 + $0x38] sm:$0xff] %vm1093, %v972
  %1102 = vst.msk [vmem:[%s3 + $0x40] sm:$0xff] %vm1093, %v973
  %1103 = vst.msk [vmem:[%s3 + $0x48] sm:$0xff] %vm1093, %v974
  %1104 = vst.msk [vmem:[%s3 + $0x50] sm:$0xff] %vm1093, %v975
  %1105 = vst.msk [vmem:[%s3 + $0x58] sm:$0xff] %vm1093, %v976
  %1106 = vst.msk [vmem:[%s3 + $0x60] sm:$0xff] %vm1093, %v977
  %1107 = vst.msk [vmem:[%s3 + $0x68] sm:$0xff] %vm1093, %v978
  %1108 = vst.msk [vmem:[%s3 + $0x70] sm:$0xff] %vm1093, %v979
  %1109 = vst.msk [vmem:[%s3 + $0x78] sm:$0xff] %vm1093, %v980
  %1110 = vst.msk [vmem:[%s3 + $0x80] sm:$0xff] %vm1093, %v981
  %1111 = vst.msk [vmem:[%s3 + $0x88] sm:$0xff] %vm1093, %v982
  %1112 = vst.msk [vmem:[%s3 + $0x90] sm:$0xff] %vm1093, %v983
  %1113 = vst.msk [vmem:[%s3 + $0x98] sm:$0xff] %vm1093, %v984
  %1114 = vst.msk [vmem:[%s3 + $0xa0] sm:$0xff] %vm1093, %v985
  %1115 = vst.msk [vmem:[%s3 + $0xa8] sm:$0xff] %vm1093, %v986
  %1116 = vst.msk [vmem:[%s3 + $0xb0] sm:$0xff] %vm1093, %v987
  %1117 = vst.msk [vmem:[%s3 + $0xb8] sm:$0xff] %vm1093, %v988
  %1118 = vst.msk [vmem:[%s3 + $0xc0] sm:$0xff] %vm1093, %v989
  %1119 = vst.msk [vmem:[%s3 + $0xc8] sm:$0xff] %vm1093, %v990
  %1120 = vst.msk [vmem:[%s3 + $0xd0] sm:$0xff] %vm1093, %v991
  %1121 = vst.msk [vmem:[%s3 + $0xd8] sm:$0xff] %vm1093, %v992
  %1122 = vst.msk [vmem:[%s3 + $0xe0] sm:$0xff] %vm1093, %v993
  %1123 = vst.msk [vmem:[%s3 + $0xe8] sm:$0xff] %vm1093, %v994
  %1124 = vst.msk [vmem:[%s3 + $0xf0] sm:$0xff] %vm1093, %v995
  %1125 = vst.msk [vmem:[%s3 + $0xf8] sm:$0xff] %vm1093, %v996
  %1126 = vst.msk [vmem:[%s3 + $0x100] sm:$0xff] %vm1093, %v997
  %1127 = vst.msk [vmem:[%s3 + $0x108] sm:$0xff] %vm1093, %v998
  %1128 = vst.msk [vmem:[%s3 + $0x110] sm:$0xff] %vm1093, %v999
  %1129 = vst.msk [vmem:[%s3 + $0x118] sm:$0xff] %vm1093, %v1000
  %1130 = vst.msk [vmem:[%s3 + $0x120] sm:$0xff] %vm1093, %v1001
  %1131 = vst.msk [vmem:[%s3 + $0x128] sm:$0xff] %vm1093, %v1002
  %1132 = vst.msk [vmem:[%s3 + $0x130] sm:$0xff] %vm1093, %v1003
  %1133 = vst.msk [vmem:[%s3 + $0x138] sm:$0xff] %vm1093, %v1004
  %1134 = vst.msk [vmem:[%s3 + $0x140] sm:$0xff] %vm1093, %v1005
  %1135 = vst.msk [vmem:[%s3 + $0x148] sm:$0xff] %vm1093, %v1006
  %1136 = vst.msk [vmem:[%s3 + $0x150] sm:$0xff] %vm1093, %v1007
  %1137 = vst.msk [vmem:[%s3 + $0x158] sm:$0xff] %vm1093, %v1008
  %1138 = vst.msk [vmem:[%s3 + $0x160] sm:$0xff] %vm1093, %v1009
  %1139 = vst.msk [vmem:[%s3 + $0x168] sm:$0xff] %vm1093, %v1010
  %1140 = vst.msk [vmem:[%s3 + $0x170] sm:$0xff] %vm1093, %v1011
  %1141 = vst.msk [vmem:[%s3 + $0x178] sm:$0xff] %vm1093, %v1012
  %1142 = vst.msk [vmem:[%s3 + $0x180] sm:$0xff] %vm1093, %v1013
  %1143 = vst.msk [vmem:[%s3 + $0x188] sm:$0xff] %vm1093, %v1014
  %1144 = vst.msk [vmem:[%s3 + $0x190] sm:$0xff] %vm1093, %v1015
  %1145 = vst.msk [vmem:[%s3 + $0x198] sm:$0xff] %vm1093, %v1016
  %1146 = vst.msk [vmem:[%s3 + $0x1a0] sm:$0xff] %vm1093, %v1017
  %1147 = vst.msk [vmem:[%s3 + $0x1a8] sm:$0xff] %vm1093, %v1018
  %1148 = vst.msk [vmem:[%s3 + $0x1b0] sm:$0xff] %vm1093, %v1019
  %1149 = vst.msk [vmem:[%s3 + $0x1b8] sm:$0xff] %vm1093, %v1020
  %1150 = vst.msk [vmem:[%s3 + $0x1c0] sm:$0xff] %vm1093, %v1021
  %1151 = vst.msk [vmem:[%s3 + $0x1c8] sm:$0xff] %vm1093, %v1022
  %1152 = vst.msk [vmem:[%s3 + $0x1d0] sm:$0xff] %vm1093, %v1023
  %1153 = vst.msk [vmem:[%s3 + $0x1d8] sm:$0xff] %vm1093, %v1024
  %1154 = vst.msk [vmem:[%s3 + $0x1e0] sm:$0xff] %vm1093, %v1025
  %1155 = vst.msk [vmem:[%s3 + $0x1e8] sm:$0xff] %vm1093, %v1026
  %1156 = vst.msk [vmem:[%s3 + $0x1f0] sm:$0xff] %vm1093, %v1027
  %1157 = vst.msk [vmem:[%s3 + $0x1f8] sm:$0xff] %vm1093, %v1028
  %1158 = vst.msk [vmem:[%s3 + $0x200] sm:$0xff] %vm1093, %v1029
  %1159 = vst.msk [vmem:[%s3 + $0x208] sm:$0xff] %vm1093, %v1030
  %1160 = vst.msk [vmem:[%s3 + $0x210] sm:$0xff] %vm1093, %v1031
  %1161 = vst.msk [vmem:[%s3 + $0x218] sm:$0xff] %vm1093, %v1032
  %1162 = vst.msk [vmem:[%s3 + $0x220] sm:$0xff] %vm1093, %v1033
  %1163 = vst.msk [vmem:[%s3 + $0x228] sm:$0xff] %vm1093, %v1034
  %1164 = vst.msk [vmem:[%s3 + $0x230] sm:$0xff] %vm1093, %v1035
  %1165 = vst.msk [vmem:[%s3 + $0x238] sm:$0xff] %vm1093, %v1036
  %1166 = vst.msk [vmem:[%s3 + $0x240] sm:$0xff] %vm1093, %v1037
  %1167 = vst.msk [vmem:[%s3 + $0x248] sm:$0xff] %vm1093, %v1038
  %1168 = vst.msk [vmem:[%s3 + $0x250] sm:$0xff] %vm1093, %v1039
  %1169 = vst.msk [vmem:[%s3 + $0x258] sm:$0xff] %vm1093, %v1040
  %1170 = vst.msk [vmem:[%s3 + $0x260] sm:$0xff] %vm1093, %v1041
  %1171 = vst.msk [vmem:[%s3 + $0x268] sm:$0xff] %vm1093, %v1042
  %1172 = vst.msk [vmem:[%s3 + $0x270] sm:$0xff] %vm1093, %v1043
  %1173 = vst.msk [vmem:[%s3 + $0x278] sm:$0xff] %vm1093, %v1044
  %1174 = vst.msk [vmem:[%s3 + $0x280] sm:$0xff] %vm1093, %v1045
  %1175 = vst.msk [vmem:[%s3 + $0x288] sm:$0xff] %vm1093, %v1046
  %1176 = vst.msk [vmem:[%s3 + $0x290] sm:$0xff] %vm1093, %v1047
  %1177 = vst.msk [vmem:[%s3 + $0x298] sm:$0xff] %vm1093, %v1048
  %1178 = vst.msk [vmem:[%s3 + $0x2a0] sm:$0xff] %vm1093, %v1049
  %1179 = vst.msk [vmem:[%s3 + $0x2a8] sm:$0xff] %vm1093, %v1050
  %1180 = vst.msk [vmem:[%s3 + $0x2b0] sm:$0xff] %vm1093, %v1051
  %1181 = vst.msk [vmem:[%s3 + $0x2b8] sm:$0xff] %vm1093, %v1052
  %1182 = vst.msk [vmem:[%s3 + $0x2c0] sm:$0xff] %vm1093, %v1053
  %1183 = vst.msk [vmem:[%s3 + $0x2c8] sm:$0xff] %vm1093, %v1054
  %1184 = vst.msk [vmem:[%s3 + $0x2d0] sm:$0xff] %vm1093, %v1055
  %1185 = vst.msk [vmem:[%s3 + $0x2d8] sm:$0xff] %vm1093, %v1056
  %1186 = vst.msk [vmem:[%s3 + $0x2e0] sm:$0xff] %vm1093, %v1057
  %1187 = vst.msk [vmem:[%s3 + $0x2e8] sm:$0xff] %vm1093, %v1058
  %1188 = vst.msk [vmem:[%s3 + $0x2f0] sm:$0xff] %vm1093, %v1059
  %1189 = vst.msk [vmem:[%s3 + $0x2f8] sm:$0xff] %vm1093, %v1060
  %1190 = vst.msk [vmem:[%s3 + $0x300] sm:$0xff] %vm1093, %v1061
  %1191 = vst.msk [vmem:[%s3 + $0x308] sm:$0xff] %vm1093, %v1062
  %1192 = vst.msk [vmem:[%s3 + $0x310] sm:$0xff] %vm1093, %v1063
  %1193 = vst.msk [vmem:[%s3 + $0x318] sm:$0xff] %vm1093, %v1064
  %1194 = vst.msk [vmem:[%s3 + $0x320] sm:$0xff] %vm1093, %v1065
  %1195 = vst.msk [vmem:[%s3 + $0x328] sm:$0xff] %vm1093, %v1066
  %1196 = vst.msk [vmem:[%s3 + $0x330] sm:$0xff] %vm1093, %v1067
  %1197 = vst.msk [vmem:[%s3 + $0x338] sm:$0xff] %vm1093, %v1068
  %1198 = vst.msk [vmem:[%s3 + $0x340] sm:$0xff] %vm1093, %v1069
  %1199 = vst.msk [vmem:[%s3 + $0x348] sm:$0xff] %vm1093, %v1070
  %1200 = vst.msk [vmem:[%s3 + $0x350] sm:$0xff] %vm1093, %v1071
  %1201 = vst.msk [vmem:[%s3 + $0x358] sm:$0xff] %vm1093, %v1072
  %1202 = vst.msk [vmem:[%s3 + $0x360] sm:$0xff] %vm1093, %v1073
  %1203 = vst.msk [vmem:[%s3 + $0x368] sm:$0xff] %vm1093, %v1074
  %1204 = vst.msk [vmem:[%s3 + $0x370] sm:$0xff] %vm1093, %v1075
  %1205 = vst.msk [vmem:[%s3 + $0x378] sm:$0xff] %vm1093, %v1076
  %1206 = vst.msk [vmem:[%s3 + $0x380] sm:$0xff] %vm1093, %v1077
  %1207 = vst.msk [vmem:[%s3 + $0x388] sm:$0xff] %vm1093, %v1078
  %1208 = vst.msk [vmem:[%s3 + $0x390] sm:$0xff] %vm1093, %v1079
  %1209 = vst.msk [vmem:[%s3 + $0x398] sm:$0xff] %vm1093, %v1080
  %1210 = vst.msk [vmem:[%s3 + $0x3a0] sm:$0xff] %vm1093, %v1081
  %1211 = vst.msk [vmem:[%s3 + $0x3a8] sm:$0xff] %vm1093, %v1082
  %1212 = vst.msk [vmem:[%s3 + $0x3b0] sm:$0xff] %vm1093, %v1083
  %1213 = vst.msk [vmem:[%s3 + $0x3b8] sm:$0xff] %vm1093, %v1084
  %1214 = vst.msk [vmem:[%s3 + $0x3c0] sm:$0xff] %vm1093, %v1085
  %1215 = vst.msk [vmem:[%s3 + $0x3c8] sm:$0xff] %vm1093, %v1086
  %1216 = vst.msk [vmem:[%s3 + $0x3d0] sm:$0xff] %vm1093, %v1087
  %1217 = vst.msk [vmem:[%s3 + $0x3d8] sm:$0xff] %vm1093, %v1088
  %1218 = vst.msk [vmem:[%s3 + $0x3e0] sm:$0xff] %vm1093, %v1089
  %1219 = vst.msk [vmem:[%s3 + $0x3e8] sm:$0xff] %vm1093, %v1090
  %1220 = vst.msk [vmem:[%s3 + $0x3f0] sm:$0xff] %vm1093, %v1091
  %1221 = vst.msk [vmem:[%s3 + $0x3f8] sm:$0xff] %vm1093, %v1092
  // Predicated region
  $region14: #{tpu_custom_call.1} parent=0 // pred_check
    _
  $region15: #{tpu_custom_call.1} parent=0 // pred_check_branch
    %1223 = sbr.rel (0) target = $region17
  $region16: #{tpu_custom_call.1} parent=0 // pred_region
    _
  $region17: #{tpu_custom_call.1} parent=0 // pred_fallthru
    _
  // Predicated region
  $region18: #{tpu_custom_call.1} parent=0 // pred_check
    _
  $region19: #{tpu_custom_call.1} parent=0 // pred_check_branch
    %1225 = sbr.rel (0) target = $region21
  $region20: #{tpu_custom_call.1} parent=0 // pred_region
    _
  $region21: #{tpu_custom_call.1} parent=0 // pred_fallthru
    _

</llo_original>
